<compile_context>
chip_gen: v5e
topology: v5e:2x2
jax: 0.10.0
libtpu: 0.0.40
codegen_flags: <defaults>
</compile_context>

<pallas_src>
import functools
import math

import jax
import jax.numpy as jnp
import numpy as np
from jax.experimental import pallas as pl
from jax.experimental.pallas import tpu as pltpu

EPS = 1e-5  # torch.nn.LayerNorm default

_BUFFERED_OK = False  # set by _probe_buffered_specs() before the first forward


def _layernorm(x, g, b):
    x = x.astype(jnp.float32)
    mu = jnp.mean(x, axis=-1, keepdims=True)
    var = jnp.mean(jnp.square(x - mu), axis=-1, keepdims=True)
    return (x - mu) * jax.lax.rsqrt(var + EPS) * g + b


# ----------------------------- Pallas kernels ------------------------------

def patch_embed_kernel(p_ref, w_ref, cls_ref, pos_ref, g_ref, b_ref, o_ref):
    # conv1 (stride == kernel == patch) as patches @ W, + CLS token,
    # + positional embedding, ln_pre — fused, one batch element per grid step.
    emb = jnp.dot(p_ref[0], w_ref[...],
                  preferred_element_type=jnp.float32)            # (P, D) f32
    pos = pos_ref[...]                                            # (S, D) f32
    g, b = g_ref[...], b_ref[...]
    o_ref[0, 0:1, :] = _layernorm(cls_ref[...] + pos[0:1, :], g, b
                                  ).astype(o_ref.dtype)
    o_ref[0, 1:, :] = _layernorm(emb + pos[1:, :], g, b).astype(o_ref.dtype)


def residual_block_kernel(x_ref, g1_ref, b1_ref, wqkv_ref, bqkv_ref,
                          wo_ref, bo_ref, g2_ref, b2_ref,
                          w1_ref, c1_ref, w2_ref, c2_ref,
                          o_ref, q_scr, k_scr, v_scr, ctx_scr,
                          *, num_heads, heads_per_chunk):
    # Full ResidualAttentionBlock for one batch element:
    #   x = x + out_proj(MHA(ln_1(x)));  x = x + c_proj(QuickGELU(c_fc(ln_2(x))))
    f32, bf16 = jnp.float32, jnp.bfloat16
    x = x_ref[0].astype(f32)                                      # (S, D)
    S, D = x.shape
    hd = D // num_heads
    n_head_chunks = num_heads // heads_per_chunk
    scale = 1.0 / math.sqrt(hd)

    # ---------------- attention half ----------------
    xn = _layernorm(x, g1_ref[...], b1_ref[...]).astype(bf16)
    # Fused, lane-dense QKV projection: ONE (S, D) @ (D, 3D) MXU pass.
    qkv = jnp.dot(xn, wqkv_ref[...], preferred_element_type=f32) + bqkv_ref[...]

    # Split heads into head-major scratch (static lane slices, cheap XLU work).
    for h in range(num_heads):
        q_scr[h] = (qkv[:, h * hd:(h + 1) * hd] * scale).astype(bf16)
        k_scr[h] = qkv[:, D + h * hd:D + (h + 1) * hd].astype(bf16)
        v_scr[h] = qkv[:, 2 * D + h * hd:2 * D + (h + 1) * hd].astype(bf16)

    dn_qk = (((2,), (2,)), ((0,), (0,)))   # (Hc,S,hd) x (Hc,S,hd) -> (Hc,S,S)
    dn_pv = (((2,), (1,)), ((0,), (0,)))   # (Hc,S,S)  x (Hc,S,hd) -> (Hc,S,hd)

    def head_chunk(i, carry):
        # Only a few heads' scores/probs/contexts are live at a time (v7x VMEM).
        h0 = pl.multiple_of(i * heads_per_chunk, heads_per_chunk)
        q_c = q_scr[pl.ds(h0, heads_per_chunk)]
        k_c = k_scr[pl.ds(h0, heads_per_chunk)]
        v_c = v_scr[pl.ds(h0, heads_per_chunk)]
        s = jax.lax.dot_general(q_c, k_c, dn_qk, preferred_element_type=f32)
        s = s - jnp.max(s, axis=-1, keepdims=True)
        e = jnp.exp(s)
        p = e * pl.reciprocal(jnp.sum(e, axis=-1, keepdims=True), approx=True)
        ctx = jax.lax.dot_general(p.astype(bf16), v_c, dn_pv,
                                  preferred_element_type=f32)
        for j in range(heads_per_chunk):   # pack this chunk lane-contiguously
            ctx_scr[i, :, j * hd:(j + 1) * hd] = ctx[j].astype(bf16)
        return carry

    jax.lax.fori_loop(0, n_head_chunks, head_chunk, 0)

    # Out-projection: chunk-major contraction, K = heads_per_chunk*hd per MXU
    # pass, lane-dense N = D.  No (H,S,D) intermediate, no cross-head reduce.
    attn = jnp.zeros((S, D), f32)
    for c in range(n_head_chunks):
        attn = attn + jnp.dot(ctx_scr[c], wo_ref[c],
                              preferred_element_type=f32)
    x = x + attn + bo_ref[...]

    # ------------------- MLP half (hidden dim chunked) --------------------
    xn2 = _layernorm(x, g2_ref[...], b2_ref[...]).astype(bf16)
    n_mlp_chunks = w1_ref.shape[0]

    def mlp_chunk(c, y):
        h = jnp.dot(xn2, w1_ref[c], preferred_element_type=f32) + c1_ref[c]
        h = h * jax.nn.sigmoid(1.702 * h)                         # QuickGELU
        return y + jnp.dot(h.astype(bf16), w2_ref[c],
                           preferred_element_type=f32)

    y = jax.lax.fori_loop(0, n_mlp_chunks, mlp_chunk, jnp.zeros((S, D), f32))
    o_ref[0] = (x + y + c2_ref[...]).astype(o_ref.dtype)


def ln_post_kernel(x_ref, g_ref, b_ref, o_ref):
    o_ref[0] = _layernorm(x_ref[0], g_ref[...], b_ref[...]).astype(o_ref.dtype)


# ------------------------------ call helpers -------------------------------

def _const_spec(shape):
    nd = len(shape)
    idx = lambda b, _n=nd: (0,) * _n
    if _BUFFERED_OK:
        # Constant index_map -> never needs a second pipeline buffer.
        return pl.BlockSpec(tuple(shape), idx, pipeline_mode=pl.Buffered(1))
    return pl.BlockSpec(tuple(shape), idx)


def _batch_spec(shape):
    nd = len(shape)
    return pl.BlockSpec((1,) + tuple(shape[1:]),
                        lambda b, _n=nd: (b,) + (0,) * (_n - 1))


def _nbytes(shape, dtype):
    return math.prod(shape) * np.dtype(dtype).itemsize


def _call_per_batch(kernel, out_shape, out_dtype, batched_args, const_args,
                    scratch=()):
    """grid=(B,): batched args get a (1, ...) block per step; constant args
    (weights) use constant index_maps so they stay VMEM-resident."""
    B = batched_args[0].shape[0]
    scratch_shapes = [pltpu.VMEM(s, d) for s, d in scratch]

    # Explicit VMEM budget sized from the actual per-step footprint.
    blk = sum(_nbytes((1,) + tuple(a.shape[1:]), a.dtype) for a in batched_args)
    cst = sum(_nbytes(a.shape, a.dtype) for a in const_args)
    out = _nbytes((1,) + tuple(out_shape[1:]), out_dtype)
    scr = sum(_nbytes(s, d) for s, d in scratch)
    cbuf = 1 if _BUFFERED_OK else 2
    need = 2 * blk + cbuf * cst + 2 * out + scr
    vmem_limit = int(min(max(2 * need + (4 << 20), 16 << 20), 64 << 20))

    return pl.pallas_call(
        kernel,
        out_shape=jax.ShapeDtypeStruct(out_shape, out_dtype),
        grid=(B,),
        in_specs=[_batch_spec(a.shape) for a in batched_args]
                 + [_const_spec(a.shape) for a in const_args],
        out_specs=_batch_spec(out_shape),
        scratch_shapes=scratch_shapes,
        compiler_params=pltpu.CompilerParams(
            dimension_semantics=("parallel",),
            vmem_limit_bytes=vmem_limit),
    )(*batched_args, *const_args)


def _probe_buffered_specs():
    """Check (eagerly, once) whether single-buffered constant inputs work."""
    try:
        mode = pl.Buffered(1)

        def kern(w_ref, x_ref, o_ref):
            o_ref[...] = x_ref[...] + w_ref[...]

        w = jnp.ones((8, 128), jnp.float32)
        x = jnp.arange(16 * 128, dtype=jnp.float32).reshape(16, 128)
        out = pl.pallas_call(
            kern,
            out_shape=jax.ShapeDtypeStruct((16, 128), jnp.float32),
            grid=(2,),
            in_specs=[pl.BlockSpec((8, 128), lambda i: (0, 0),
                                   pipeline_mode=mode),
                      pl.BlockSpec((8, 128), lambda i: (i, 0))],
            out_specs=pl.BlockSpec((8, 128), lambda i: (i, 0)),
        )(w, x)
        out = jax.block_until_ready(out)
        return bool(jnp.allclose(out, x + 1.0))
    except Exception:
        return False


# --------------------------- one-time weight packing ------------------------

def prepare_params(params, *, num_heads, head_group=4, mlp_chunk=2048):
    """Repack weights ONCE, outside the jitted forward (layout only)."""
    D = params["conv_w"].shape[0]
    hd = D // num_heads
    hpc = math.gcd(num_heads, head_group)     # heads per attention chunk
    nhc = num_heads // hpc
    cw = hpc * hd
    bf16, f32 = jnp.bfloat16, jnp.float32
    row = lambda v: v.reshape(1, -1).astype(f32)

    packed = dict(
        w_patch=params["conv_w"].reshape(D, -1).T.astype(bf16),   # (Cpp, D)
        cls=params["class_embedding"].reshape(1, D).astype(f32),
        pos=params["pos_embedding"].astype(f32),                  # (S, D)
        ln_pre_g=row(params["ln_pre_g"]), ln_pre_b=row(params["ln_pre_b"]),
        ln_post_g=row(params["ln_post_g"]), ln_post_b=row(params["ln_post_b"]),
        blocks=[],
    )
    for blk in params["blocks"]:
        hidden = blk["c_fc_w"].shape[0]
        hc = mlp_chunk if hidden % mlp_chunk == 0 else hidden
        nc = hidden // hc
        packed["blocks"].append(dict(
            ln1_g=row(blk["ln1_g"]), ln1_b=row(blk["ln1_b"]),
            wqkv=blk["in_proj_w"].T.astype(bf16),                 # (D, 3D)
            bqkv=row(blk["in_proj_b"]),
            wo=blk["out_proj_w"].T.reshape(nhc, cw, D).astype(bf16),
            bo=row(blk["out_proj_b"]),
            ln2_g=row(blk["ln2_g"]), ln2_b=row(blk["ln2_b"]),
            w1=blk["c_fc_w"].T.reshape(D, nc, hc).transpose(1, 0, 2)
                .astype(bf16),                                    # (nc, D, hc)
            b1=blk["c_fc_b"].reshape(nc, 1, hc).astype(f32),
            w2=blk["c_proj_w"].T.reshape(nc, hc, D).astype(bf16), # (nc, hc, D)
            c2=row(blk["c_proj_b"]),
        ))
    return packed


# ------------------------------ model wrapper ------------------------------

def visual_transformer_forward(x, packed, *, patch, num_heads):
    B, C, H, W = x.shape
    _, D = packed["w_patch"].shape
    gh, gw = H // patch, W // patch
    P = gh * gw
    S = P + 1
    hd = D // num_heads
    bf16 = jnp.bfloat16

    # host-side glue: non-overlapping patch extraction (layout only)
    xp = x.reshape(B, C, gh, patch, gw, patch).transpose(0, 2, 4, 1, 3, 5)
    xp = xp.reshape(B, P, C * patch * patch).astype(bf16)

    # conv1 + CLS + positional embedding + ln_pre  (one fused kernel)
    tokens = _call_per_batch(
        patch_embed_kernel, (B, S, D), bf16, (xp,),
        (packed["w_patch"], packed["cls"], packed["pos"],
         packed["ln_pre_g"], packed["ln_pre_b"]))

    # transformer: one fused pallas_call per ResidualAttentionBlock
    for blk in packed["blocks"]:
        nhc, cw, _ = blk["wo"].shape
        hpc = num_heads // nhc
        kern = functools.partial(residual_block_kernel,
                                 num_heads=num_heads, heads_per_chunk=hpc)
        consts = (blk["ln1_g"], blk["ln1_b"], blk["wqkv"], blk["bqkv"],
                  blk["wo"], blk["bo"], blk["ln2_g"], blk["ln2_b"],
                  blk["w1"], blk["b1"], blk["w2"], blk["c2"])
        scratch = (((num_heads, S, hd), bf16),     # q (pre-scaled)
                   ((num_heads, S, hd), bf16),     # k
                   ((num_heads, S, hd), bf16),     # v
                   ((nhc, S, cw), bf16))           # per-chunk packed context
        tokens = _call_per_batch(kern, (B, S, D), bf16, (tokens,), consts,
                                 scratch=scratch)

    # ln_post (back to f32 for the returned features)
    out = _call_per_batch(
        ln_post_kernel, (B, S, D), jnp.float32, (tokens,),
        (packed["ln_post_g"], packed["ln_post_b"]))
    return out, out[:, 0, :]


# --------------------------- pure-JAX reference ----------------------------

def reference_forward(x, params, *, patch, num_heads):
    B, C, H, W = x.shape
    D = params["conv_w"].shape[0]
    gh, gw = H // patch, W // patch
    P = gh * gw
    S = P + 1
    hd = D // num_heads

    xp = x.reshape(B, C, gh, patch, gw, patch).transpose(0, 2, 4, 1, 3, 5)
    xp = xp.reshape(B, P, C * patch * patch)
    emb = xp @ params["conv_w"].reshape(D, -1).T
    cls = jnp.broadcast_to(params["class_embedding"][None, None, :], (B, 1, D))
    t = jnp.concatenate([cls, emb], axis=1) + params["pos_embedding"][None]
    t = _layernorm(t, params["ln_pre_g"], params["ln_pre_b"])

    for blk in params["blocks"]:
        xn = _layernorm(t, blk["ln1_g"], blk["ln1_b"])
        qkv = xn @ blk["in_proj_w"].T + blk["in_proj_b"]
        q, k, v = qkv[..., :D], qkv[..., D:2 * D], qkv[..., 2 * D:]
        q = q.reshape(B, S, num_heads, hd).transpose(0, 2, 1, 3) / math.sqrt(hd)
        k = k.reshape(B, S, num_heads, hd).transpose(0, 2, 1, 3)
        v = v.reshape(B, S, num_heads, hd).transpose(0, 2, 1, 3)
        p = jax.nn.softmax(q @ k.transpose(0, 1, 3, 2), axis=-1)
        a = (p @ v).transpose(0, 2, 1, 3).reshape(B, S, D)
        t = t + a @ blk["out_proj_w"].T + blk["out_proj_b"]
        xn = _layernorm(t, blk["ln2_g"], blk["ln2_b"])
        h = xn @ blk["c_fc_w"].T + blk["c_fc_b"]
        h = h * jax.nn.sigmoid(1.702 * h)
        t = t + h @ blk["c_proj_w"].T + blk["c_proj_b"]

    t = _layernorm(t, params["ln_post_g"], params["ln_post_b"])
    return t, t[:, 0, :]


# ------------------------- deterministic parameters ------------------------

def init_params(key, *, C, D, patch, S, layers):
    hidden = 4 * D
    keys = iter(jax.random.split(key, 8 + 12 * layers))

    def rnd(shape, scale=0.02):
        return (scale * jax.random.normal(next(keys), shape)).astype(jnp.float32)

    params = dict(
        conv_w=rnd((D, C, patch, patch)),            # conv1.weight (no bias)
        class_embedding=rnd((D,)),
        pos_embedding=rnd((S, D)),
        ln_pre_g=1.0 + rnd((D,), 0.1), ln_pre_b=rnd((D,), 0.1),
        ln_post_g=1.0 + rnd((D,), 0.1), ln_post_b=rnd((D,), 0.1),
        blocks=[],
    )
    for _ in range(layers):
        params["blocks"].append(dict(
            ln1_g=1.0 + rnd((D,), 0.1), ln1_b=rnd((D,), 0.1),
            in_proj_w=rnd((3 * D, D)), in_proj_b=rnd((3 * D,)),
            out_proj_w=rnd((D, D)), out_proj_b=rnd((D,)),
            ln2_g=1.0 + rnd((D,), 0.1), ln2_b=rnd((D,), 0.1),
            c_fc_w=rnd((hidden, D)), c_fc_b=rnd((hidden,)),
            c_proj_w=rnd((D, hidden)), c_proj_b=rnd((D,)),
        ))
    return params


# ----------------------------------- main -----------------------------------

if __name__ == "__main__":
    B, C, H, W = 2, 3, 16, 16
    patch = 8
    D = 32
    num_heads = 4
    layers = 2
    S = (H // patch) * (W // patch) + 1              # 4 patches + CLS = 5

    key = jax.random.PRNGKey(0)
    kx, kp = jax.random.split(key)
    x = jax.random.normal(kx, (B, C, H, W), dtype=jnp.float32)
    params = init_params(kp, C=C, D=D, patch=patch, S=S, layers=layers)

    # one-time, outside the jitted forward
    _BUFFERED_OK = _probe_buffered_specs()
    packed = prepare_params(params, num_heads=num_heads)

    fwd = jax.jit(functools.partial(visual_transformer_forward,
                                    patch=patch, num_heads=num_heads))
    out, pooled = fwd(x, packed)
    jax.block_until_ready((out, pooled))

    ref_out, ref_pooled = reference_forward(x, params, patch=patch,
                                            num_heads=num_heads)
    assert out.shape == (B, S, D) and pooled.shape == (B, D)
    assert bool(jnp.all(jnp.isfinite(out)))
    assert bool(jnp.allclose(out, ref_out, atol=3e-2, rtol=3e-2))
    assert bool(jnp.allclose(pooled, ref_pooled, atol=3e-2, rtol=3e-2))

    print("KERNEL_OK")
</pallas_src>

<mosaic_0001>
module attributes {stable_mosaic.version = 11 : i64} {
  func.func @kern(%arg0: i32, %arg1: memref<8x128xf32, #tpu.memory_space<vmem>>, %arg2: memref<8x128xf32, #tpu.memory_space<vmem>>, %arg3: memref<8x128xf32, #tpu.memory_space<vmem>>) attributes {dimension_semantics = [#tpu.dimension_semantics<arbitrary>], iteration_bounds = array<i64: 2>, scalar_prefetch = 0 : i64, scratch_operands = 0 : i64, tpu.core_type = #tpu.core_type<tc>, window_params = [{pipeline_mode = #tpu.pipeline_mode<synchronous>, transform_indices = @transform_0, window_bounds = array<i64: 8, 128>}, {transform_indices = @transform_1, window_bounds = array<i64: 8, 128>}, {transform_indices = @transform_2, window_bounds = array<i64: 8, 128>}]} {
    %c0 = arith.constant 0 : index
    %c0_0 = arith.constant 0 : index
    %0 = vector.load %arg2[%c0, %c0_0] : memref<8x128xf32, #tpu.memory_space<vmem>>, vector<8x128xf32>
    %c0_1 = arith.constant 0 : index
    %c0_2 = arith.constant 0 : index
    %1 = vector.load %arg1[%c0_1, %c0_2] : memref<8x128xf32, #tpu.memory_space<vmem>>, vector<8x128xf32>
    %2 = arith.addf %0, %1 : vector<8x128xf32>
    %c0_3 = arith.constant 0 : index
    %c0_4 = arith.constant 0 : index
    %3 = vector.load %arg3[%c0_3, %c0_4] : memref<8x128xf32, #tpu.memory_space<vmem>>, vector<8x128xf32>
    tpu.vector_store %arg3[%c0_3, %c0_4], %2 {strides = array<i32>} : memref<8x128xf32, #tpu.memory_space<vmem>>, vector<8x128xf32>,
    return
  }
  func.func @transform_0(%arg0: i32) -> (i32, i32) {
    %c0_i32 = arith.constant 0 : i32
    %c0_i32_0 = arith.constant 0 : i32
    %c0_i32_1 = arith.constant 0 : i32
    return %c0_i32, %c0_i32_0 : i32, i32
  }
  func.func @transform_1(%arg0: i32) -> (i32, i32) {
    %c0_i32 = arith.constant 0 : i32
    %c0_i32_0 = arith.constant 0 : i32
    return %arg0, %c0_i32 : i32, i32
  }
  func.func @transform_2(%arg0: i32) -> (i32, i32) {
    %c0_i32 = arith.constant 0 : i32
    %c0_i32_0 = arith.constant 0 : i32
    return %arg0, %c0_i32 : i32, i32
  }
}

module attributes {stable_mosaic.version = 11 : i64} {
  func.func @residual_block_kernel(%arg0: i32, %arg1: memref<1x5x32xbf16, #tpu.memory_space<vmem>>, %arg2: memref<1x32xf32, #tpu.memory_space<vmem>>, %arg3: memref<1x32xf32, #tpu.memory_space<vmem>>, %arg4: memref<32x96xbf16, #tpu.memory_space<vmem>>, %arg5: memref<1x96xf32, #tpu.memory_space<vmem>>, %arg6: memref<1x32x32xbf16, #tpu.memory_space<vmem>>, %arg7: memref<1x32xf32, #tpu.memory_space<vmem>>, %arg8: memref<1x32xf32, #tpu.memory_space<vmem>>, %arg9: memref<1x32xf32, #tpu.memory_space<vmem>>, %arg10: memref<1x32x128xbf16, #tpu.memory_space<vmem>>, %arg11: memref<1x1x128xf32, #tpu.memory_space<vmem>>, %arg12: memref<1x128x32xbf16, #tpu.memory_space<vmem>>, %arg13: memref<1x32xf32, #tpu.memory_space<vmem>>, %arg14: memref<1x5x32xbf16, #tpu.memory_space<vmem>>, %arg15: memref<4x5x8xbf16, #tpu.memory_space<vmem>>, %arg16: memref<4x5x8xbf16, #tpu.memory_space<vmem>>, %arg17: memref<4x5x8xbf16, #tpu.memory_space<vmem>>, %arg18: memref<1x5x32xbf16, #tpu.memory_space<vmem>>) attributes {dimension_semantics = [#tpu.dimension_semantics<parallel>], iteration_bounds = array<i64: 2>, scalar_prefetch = 0 : i64, scratch_operands = 4 : i64, tpu.core_type = #tpu.core_type<tc>, window_params = [{transform_indices = @transform_0, window_bounds = array<i64: 1, 5, 32>}, {pipeline_mode = #tpu.pipeline_mode<synchronous>, transform_indices = @transform_1, window_bounds = array<i64: 1, 32>}, {pipeline_mode = #tpu.pipeline_mode<synchronous>, transform_indices = @transform_2, window_bounds = array<i64: 1, 32>}, {pipeline_mode = #tpu.pipeline_mode<synchronous>, transform_indices = @transform_3, window_bounds = array<i64: 32, 96>}, {pipeline_mode = #tpu.pipeline_mode<synchronous>, transform_indices = @transform_4, window_bounds = array<i64: 1, 96>}, {pipeline_mode = #tpu.pipeline_mode<synchronous>, transform_indices = @transform_5, window_bounds = array<i64: 1, 32, 32>}, {pipeline_mode = #tpu.pipeline_mode<synchronous>, transform_indices = @transform_6, window_bounds = array<i64: 1, 32>}, {pipeline_mode = #tpu.pipeline_mode<synchronous>, transform_indices = @transform_7, window_bounds = array<i64: 1, 32>}, {pipeline_mode = #tpu.pipeline_mode<synchronous>, transform_indices = @transform_8, window_bounds = array<i64: 1, 32>}, {pipeline_mode = #tpu.pipeline_mode<synchronous>, transform_indices = @transform_9, window_bounds = array<i64: 1, 32, 128>}, {pipeline_mode = #tpu.pipeline_mode<synchronous>, transform_indices = @transform_10, window_bounds = array<i64: 1, 1, 128>}, {pipeline_mode = #tpu.pipeline_mode<synchronous>, transform_indices = @transform_11, window_bounds = array<i64: 1, 128, 32>}, {pipeline_mode = #tpu.pipeline_mode<synchronous>, transform_indices = @transform_12, window_bounds = array<i64: 1, 32>}, {transform_indices = @transform_13, window_bounds = array<i64: 1, 5, 32>}]} {
    %c0 = arith.constant 0 : index
    %c0_0 = arith.constant 0 : index
    %c0_1 = arith.constant 0 : index
    %0 = vector.load %arg1[%c0, %c0_0, %c0_1] : memref<1x5x32xbf16, #tpu.memory_space<vmem>>, vector<1x5x32xbf16>
    %1 = vector.shape_cast %0 : vector<1x5x32xbf16> to vector<5x32xbf16>
    %2 = arith.extf %1 : vector<5x32xbf16> to vector<5x32xf32>
    %c0_2 = arith.constant 0 : index
    %c0_3 = arith.constant 0 : index
    %3 = vector.load %arg2[%c0_2, %c0_3] : memref<1x32xf32, #tpu.memory_space<vmem>>, vector<1x32xf32>
    %c0_4 = arith.constant 0 : index
    %c0_5 = arith.constant 0 : index
    %4 = vector.load %arg3[%c0_4, %c0_5] : memref<1x32xf32, #tpu.memory_space<vmem>>, vector<1x32xf32>
    %cst = arith.constant dense<0.000000e+00> : vector<5xf32>
    %5 = vector.multi_reduction <add>, %2, %cst [1] : vector<5x32xf32> to vector<5xf32>
    %6 = vector.shape_cast %5 : vector<5xf32> to vector<5x1xf32>
    %cst_6 = arith.constant 3.200000e+01 : f32
    %7 = vector.broadcast %cst_6 : f32 to vector<5x1xf32>
    %8 = arith.divf %6, %7 : vector<5x1xf32>
    %9 = vector.broadcast %8 : vector<5x1xf32> to vector<5x32xf32>
    %10 = arith.subf %2, %9 : vector<5x32xf32>
    %11 = arith.mulf %10, %10 : vector<5x32xf32>
    %cst_7 = arith.constant dense<0.000000e+00> : vector<5xf32>
    %12 = vector.multi_reduction <add>, %11, %cst_7 [1] : vector<5x32xf32> to vector<5xf32>
    %13 = vector.shape_cast %12 : vector<5xf32> to vector<5x1xf32>
    %cst_8 = arith.constant 3.200000e+01 : f32
    %14 = vector.broadcast %cst_8 : f32 to vector<5x1xf32>
    %15 = arith.divf %13, %14 : vector<5x1xf32>
    %16 = vector.broadcast %8 : vector<5x1xf32> to vector<5x32xf32>
    %17 = arith.subf %2, %16 : vector<5x32xf32>
    %cst_9 = arith.constant 9.99999974E-6 : f32
    %18 = vector.broadcast %cst_9 : f32 to vector<5x1xf32>
    %19 = arith.addf %15, %18 : vector<5x1xf32>
    %20 = math.rsqrt %19 : vector<5x1xf32>
    %21 = vector.broadcast %20 : vector<5x1xf32> to vector<5x32xf32>
    %22 = arith.mulf %17, %21 : vector<5x32xf32>
    %23 = vector.broadcast %3 : vector<1x32xf32> to vector<5x32xf32>
    %24 = arith.mulf %22, %23 : vector<5x32xf32>
    %25 = vector.broadcast %4 : vector<1x32xf32> to vector<5x32xf32>
    %26 = arith.addf %24, %25 : vector<5x32xf32>
    %27 = arith.truncf %26 : vector<5x32xf32> to vector<5x32xbf16>
    %c0_10 = arith.constant 0 : index
    %c0_11 = arith.constant 0 : index
    %28 = vector.load %arg4[%c0_10, %c0_11] : memref<32x96xbf16, #tpu.memory_space<vmem>>, vector<32x96xbf16>
    %cst_12 = arith.constant dense<0.000000e+00> : vector<5x96xf32>
    %29 = tpu.matmul %27, %28, %cst_12 {dimension_numbers = #tpu.dot_dimension_numbers<[1], [0], [0], [1], [0, 0, 1, 1], [], []>} : vector<5x32xbf16>, vector<32x96xbf16>, vector<5x96xf32> -> vector<5x96xf32>
    %c0_13 = arith.constant 0 : index
    %c0_14 = arith.constant 0 : index
    %30 = vector.load %arg5[%c0_13, %c0_14] : memref<1x96xf32, #tpu.memory_space<vmem>>, vector<1x96xf32>
    %31 = vector.broadcast %30 : vector<1x96xf32> to vector<5x96xf32>
    %32 = arith.addf %29, %31 : vector<5x96xf32>
    %33 = vector.extract_strided_slice %32 {offsets = [0, 0], sizes = [5, 8], strides = [1, 1]} : vector<5x96xf32> to vector<5x8xf32>
    %cst_15 = arith.constant 0.353553385 : f32
    %34 = vector.broadcast %cst_15 : f32 to vector<5x8xf32>
    %35 = arith.mulf %33, %34 : vector<5x8xf32>
    %36 = arith.truncf %35 : vector<5x8xf32> to vector<5x8xbf16>
    %c0_16 = arith.constant 0 : index
    %c0_17 = arith.constant 0 : index
    %c0_18 = arith.constant 0 : index
    %37 = vector.load %arg15[%c0_16, %c0_17, %c0_18] : memref<4x5x8xbf16, #tpu.memory_space<vmem>>, vector<1x5x8xbf16>
    %38 = vector.shape_cast %37 : vector<1x5x8xbf16> to vector<5x8xbf16>
    %39 = vector.shape_cast %36 : vector<5x8xbf16> to vector<1x5x8xbf16>
    tpu.vector_store %arg15[%c0_16, %c0_17, %c0_18], %39 {strides = array<i32>} : memref<4x5x8xbf16, #tpu.memory_space<vmem>>, vector<1x5x8xbf16>,
    %40 = vector.extract_strided_slice %32 {offsets = [0, 32], sizes = [5, 8], strides = [1, 1]} : vector<5x96xf32> to vector<5x8xf32>
    %41 = arith.truncf %40 : vector<5x8xf32> to vector<5x8xbf16>
    %c0_19 = arith.constant 0 : index
    %c0_20 = arith.constant 0 : index
    %c0_21 = arith.constant 0 : index
    %42 = vector.load %arg16[%c0_19, %c0_20, %c0_21] : memref<4x5x8xbf16, #tpu.memory_space<vmem>>, vector<1x5x8xbf16>
    %43 = vector.shape_cast %42 : vector<1x5x8xbf16> to vector<5x8xbf16>
    %44 = vector.shape_cast %41 : vector<5x8xbf16> to vector<1x5x8xbf16>
    tpu.vector_store %arg16[%c0_19, %c0_20, %c0_21], %44 {strides = array<i32>} : memref<4x5x8xbf16, #tpu.memory_space<vmem>>, vector<1x5x8xbf16>,
    %45 = vector.extract_strided_slice %32 {offsets = [0, 64], sizes = [5, 8], strides = [1, 1]} : vector<5x96xf32> to vector<5x8xf32>
    %46 = arith.truncf %45 : vector<5x8xf32> to vector<5x8xbf16>
    %c0_22 = arith.constant 0 : index
    %c0_23 = arith.constant 0 : index
    %c0_24 = arith.constant 0 : index
    %47 = vector.load %arg17[%c0_22, %c0_23, %c0_24] : memref<4x5x8xbf16, #tpu.memory_space<vmem>>, vector<1x5x8xbf16>
    %48 = vector.shape_cast %47 : vector<1x5x8xbf16> to vector<5x8xbf16>
    %49 = vector.shape_cast %46 : vector<5x8xbf16> to vector<1x5x8xbf16>
    tpu.vector_store %arg17[%c0_22, %c0_23, %c0_24], %49 {strides = array<i32>} : memref<4x5x8xbf16, #tpu.memory_space<vmem>>, vector<1x5x8xbf16>,
    %50 = vector.extract_strided_slice %32 {offsets = [0, 8], sizes = [5, 8], strides = [1, 1]} : vector<5x96xf32> to vector<5x8xf32>
    %cst_25 = arith.constant 0.353553385 : f32
    %51 = vector.broadcast %cst_25 : f32 to vector<5x8xf32>
    %52 = arith.mulf %50, %51 : vector<5x8xf32>
    %53 = arith.truncf %52 : vector<5x8xf32> to vector<5x8xbf16>
    %c1 = arith.constant 1 : index
    %c0_26 = arith.constant 0 : index
    %c0_27 = arith.constant 0 : index
    %54 = vector.load %arg15[%c1, %c0_26, %c0_27] : memref<4x5x8xbf16, #tpu.memory_space<vmem>>, vector<1x5x8xbf16>
    %55 = vector.shape_cast %54 : vector<1x5x8xbf16> to vector<5x8xbf16>
    %56 = vector.shape_cast %53 : vector<5x8xbf16> to vector<1x5x8xbf16>
    tpu.vector_store %arg15[%c1, %c0_26, %c0_27], %56 {strides = array<i32>} : memref<4x5x8xbf16, #tpu.memory_space<vmem>>, vector<1x5x8xbf16>,
    %57 = vector.extract_strided_slice %32 {offsets = [0, 40], sizes = [5, 8], strides = [1, 1]} : vector<5x96xf32> to vector<5x8xf32>
    %58 = arith.truncf %57 : vector<5x8xf32> to vector<5x8xbf16>
    %c1_28 = arith.constant 1 : index
    %c0_29 = arith.constant 0 : index
    %c0_30 = arith.constant 0 : index
    %59 = vector.load %arg16[%c1_28, %c0_29, %c0_30] : memref<4x5x8xbf16, #tpu.memory_space<vmem>>, vector<1x5x8xbf16>
    %60 = vector.shape_cast %59 : vector<1x5x8xbf16> to vector<5x8xbf16>
    %61 = vector.shape_cast %58 : vector<5x8xbf16> to vector<1x5x8xbf16>
    tpu.vector_store %arg16[%c1_28, %c0_29, %c0_30], %61 {strides = array<i32>} : memref<4x5x8xbf16, #tpu.memory_space<vmem>>, vector<1x5x8xbf16>,
    %62 = vector.extract_strided_slice %32 {offsets = [0, 72], sizes = [5, 8], strides = [1, 1]} : vector<5x96xf32> to vector<5x8xf32>
    %63 = arith.truncf %62 : vector<5x8xf32> to vector<5x8xbf16>
    %c1_31 = arith.constant 1 : index
    %c0_32 = arith.constant 0 : index
    %c0_33 = arith.constant 0 : index
    %64 = vector.load %arg17[%c1_31, %c0_32, %c0_33] : memref<4x5x8xbf16, #tpu.memory_space<vmem>>, vector<1x5x8xbf16>
    %65 = vector.shape_cast %64 : vector<1x5x8xbf16> to vector<5x8xbf16>
    %66 = vector.shape_cast %63 : vector<5x8xbf16> to vector<1x5x8xbf16>
    tpu.vector_store %arg17[%c1_31, %c0_32, %c0_33], %66 {strides = array<i32>} : memref<4x5x8xbf16, #tpu.memory_space<vmem>>, vector<1x5x8xbf16>,
    %67 = vector.extract_strided_slice %32 {offsets = [0, 16], sizes = [5, 8], strides = [1, 1]} : vector<5x96xf32> to vector<5x8xf32>
    %cst_34 = arith.constant 0.353553385 : f32
    %68 = vector.broadcast %cst_34 : f32 to vector<5x8xf32>
    %69 = arith.mulf %67, %68 : vector<5x8xf32>
    %70 = arith.truncf %69 : vector<5x8xf32> to vector<5x8xbf16>
    %c2 = arith.constant 2 : index
    %c0_35 = arith.constant 0 : index
    %c0_36 = arith.constant 0 : index
    %71 = vector.load %arg15[%c2, %c0_35, %c0_36] : memref<4x5x8xbf16, #tpu.memory_space<vmem>>, vector<1x5x8xbf16>
    %72 = vector.shape_cast %71 : vector<1x5x8xbf16> to vector<5x8xbf16>
    %73 = vector.shape_cast %70 : vector<5x8xbf16> to vector<1x5x8xbf16>
    tpu.vector_store %arg15[%c2, %c0_35, %c0_36], %73 {strides = array<i32>} : memref<4x5x8xbf16, #tpu.memory_space<vmem>>, vector<1x5x8xbf16>,
    %74 = vector.extract_strided_slice %32 {offsets = [0, 48], sizes = [5, 8], strides = [1, 1]} : vector<5x96xf32> to vector<5x8xf32>
    %75 = arith.truncf %74 : vector<5x8xf32> to vector<5x8xbf16>
    %c2_37 = arith.constant 2 : index
    %c0_38 = arith.constant 0 : index
    %c0_39 = arith.constant 0 : index
    %76 = vector.load %arg16[%c2_37, %c0_38, %c0_39] : memref<4x5x8xbf16, #tpu.memory_space<vmem>>, vector<1x5x8xbf16>
    %77 = vector.shape_cast %76 : vector<1x5x8xbf16> to vector<5x8xbf16>
    %78 = vector.shape_cast %75 : vector<5x8xbf16> to vector<1x5x8xbf16>
    tpu.vector_store %arg16[%c2_37, %c0_38, %c0_39], %78 {strides = array<i32>} : memref<4x5x8xbf16, #tpu.memory_space<vmem>>, vector<1x5x8xbf16>,
    %79 = vector.extract_strided_slice %32 {offsets = [0, 80], sizes = [5, 8], strides = [1, 1]} : vector<5x96xf32> to vector<5x8xf32>
    %80 = arith.truncf %79 : vector<5x8xf32> to vector<5x8xbf16>
    %c2_40 = arith.constant 2 : index
    %c0_41 = arith.constant 0 : index
    %c0_42 = arith.constant 0 : index
    %81 = vector.load %arg17[%c2_40, %c0_41, %c0_42] : memref<4x5x8xbf16, #tpu.memory_space<vmem>>, vector<1x5x8xbf16>
    %82 = vector.shape_cast %81 : vector<1x5x8xbf16> to vector<5x8xbf16>
    %83 = vector.shape_cast %80 : vector<5x8xbf16> to vector<1x5x8xbf16>
    tpu.vector_store %arg17[%c2_40, %c0_41, %c0_42], %83 {strides = array<i32>} : memref<4x5x8xbf16, #tpu.memory_space<vmem>>, vector<1x5x8xbf16>,
    %84 = vector.extract_strided_slice %32 {offsets = [0, 24], sizes = [5, 8], strides = [1, 1]} : vector<5x96xf32> to vector<5x8xf32>
    %cst_43 = arith.constant 0.353553385 : f32
    %85 = vector.broadcast %cst_43 : f32 to vector<5x8xf32>
    %86 = arith.mulf %84, %85 : vector<5x8xf32>
    %87 = arith.truncf %86 : vector<5x8xf32> to vector<5x8xbf16>
    %c3 = arith.constant 3 : index
    %c0_44 = arith.constant 0 : index
    %c0_45 = arith.constant 0 : index
    %88 = vector.load %arg15[%c3, %c0_44, %c0_45] : memref<4x5x8xbf16, #tpu.memory_space<vmem>>, vector<1x5x8xbf16>
    %89 = vector.shape_cast %88 : vector<1x5x8xbf16> to vector<5x8xbf16>
    %90 = vector.shape_cast %87 : vector<5x8xbf16> to vector<1x5x8xbf16>
    tpu.vector_store %arg15[%c3, %c0_44, %c0_45], %90 {strides = array<i32>} : memref<4x5x8xbf16, #tpu.memory_space<vmem>>, vector<1x5x8xbf16>,
    %91 = vector.extract_strided_slice %32 {offsets = [0, 56], sizes = [5, 8], strides = [1, 1]} : vector<5x96xf32> to vector<5x8xf32>
    %92 = arith.truncf %91 : vector<5x8xf32> to vector<5x8xbf16>
    %c3_46 = arith.constant 3 : index
    %c0_47 = arith.constant 0 : index
    %c0_48 = arith.constant 0 : index
    %93 = vector.load %arg16[%c3_46, %c0_47, %c0_48] : memref<4x5x8xbf16, #tpu.memory_space<vmem>>, vector<1x5x8xbf16>
    %94 = vector.shape_cast %93 : vector<1x5x8xbf16> to vector<5x8xbf16>
    %95 = vector.shape_cast %92 : vector<5x8xbf16> to vector<1x5x8xbf16>
    tpu.vector_store %arg16[%c3_46, %c0_47, %c0_48], %95 {strides = array<i32>} : memref<4x5x8xbf16, #tpu.memory_space<vmem>>, vector<1x5x8xbf16>,
    %96 = vector.extract_strided_slice %32 {offsets = [0, 88], sizes = [5, 8], strides = [1, 1]} : vector<5x96xf32> to vector<5x8xf32>
    %97 = arith.truncf %96 : vector<5x8xf32> to vector<5x8xbf16>
    %c3_49 = arith.constant 3 : index
    %c0_50 = arith.constant 0 : index
    %c0_51 = arith.constant 0 : index
    %98 = vector.load %arg17[%c3_49, %c0_50, %c0_51] : memref<4x5x8xbf16, #tpu.memory_space<vmem>>, vector<1x5x8xbf16>
    %99 = vector.shape_cast %98 : vector<1x5x8xbf16> to vector<5x8xbf16>
    %100 = vector.shape_cast %97 : vector<5x8xbf16> to vector<1x5x8xbf16>
    tpu.vector_store %arg17[%c3_49, %c0_50, %c0_51], %100 {strides = array<i32>} : memref<4x5x8xbf16, #tpu.memory_space<vmem>>, vector<1x5x8xbf16>,
    %c0_i32 = arith.constant 0 : i32
    %c4_i32 = arith.constant 4 : i32
    %101 = arith.muli %c0_i32, %c4_i32 : i32
    %102 = tpu.assume_multiple %101, 4 : i32
    %103 = arith.index_cast %102 : i32 to index
    %c0_52 = arith.constant 0 : index
    %c0_53 = arith.constant 0 : index
    %104 = vector.load %arg15[%103, %c0_52, %c0_53] : memref<4x5x8xbf16, #tpu.memory_space<vmem>>, vector<4x5x8xbf16>
    %105 = arith.index_cast %102 : i32 to index
    %c0_54 = arith.constant 0 : index
    %c0_55 = arith.constant 0 : index
    %106 = vector.load %arg16[%105, %c0_54, %c0_55] : memref<4x5x8xbf16, #tpu.memory_space<vmem>>, vector<4x5x8xbf16>
    %107 = arith.index_cast %102 : i32 to index
    %c0_56 = arith.constant 0 : index
    %c0_57 = arith.constant 0 : index
    %108 = vector.load %arg17[%107, %c0_56, %c0_57] : memref<4x5x8xbf16, #tpu.memory_space<vmem>>, vector<4x5x8xbf16>
    %cst_58 = arith.constant dense<0.000000e+00> : vector<4x5x5xf32>
    %109 = tpu.matmul %104, %106, %cst_58 {dimension_numbers = #tpu.dot_dimension_numbers<[2], [2], [1], [1], [0, 0, 0, 1, 1, 1], [0], [0]>} : vector<4x5x8xbf16>, vector<4x5x8xbf16>, vector<4x5x5xf32> -> vector<4x5x5xf32>
    %cst_59 = arith.constant dense<0xFF800000> : vector<4x5xf32>
    %110 = vector.multi_reduction <maximumf>, %109, %cst_59 [2] : vector<4x5x5xf32> to vector<4x5xf32>
    %111 = vector.shape_cast %110 : vector<4x5xf32> to vector<4x5x1xf32>
    %112 = vector.broadcast %111 : vector<4x5x1xf32> to vector<4x5x5xf32>
    %113 = arith.subf %109, %112 : vector<4x5x5xf32>
    %114 = math.exp %113 : vector<4x5x5xf32>
    %cst_60 = arith.constant dense<0.000000e+00> : vector<4x5xf32>
    %115 = vector.multi_reduction <add>, %114, %cst_60 [2] : vector<4x5x5xf32> to vector<4x5xf32>
    %116 = vector.shape_cast %115 : vector<4x5xf32> to vector<4x5x1xf32>
    %117 = tpu.reciprocal %116 {approx = true} : vector<4x5x1xf32> -> vector<4x5x1xf32>
    %118 = vector.broadcast %117 : vector<4x5x1xf32> to vector<4x5x5xf32>
    %119 = arith.mulf %114, %118 : vector<4x5x5xf32>
    %120 = arith.truncf %119 : vector<4x5x5xf32> to vector<4x5x5xbf16>
    %cst_61 = arith.constant dense<0.000000e+00> : vector<4x5x8xf32>
    %121 = tpu.matmul %120, %108, %cst_61 {dimension_numbers = #tpu.dot_dimension_numbers<[2], [1], [1], [2], [0, 0, 0, 1, 1, 2], [0], [0]>} : vector<4x5x5xbf16>, vector<4x5x8xbf16>, vector<4x5x8xf32> -> vector<4x5x8xf32>
    %122 = vector.extract_strided_slice %121 {offsets = [0, 0, 0], sizes = [1, 5, 8], strides = [1, 1, 1]} : vector<4x5x8xf32> to vector<1x5x8xf32>
    %123 = vector.shape_cast %122 : vector<1x5x8xf32> to vector<5x8xf32>
    %124 = arith.truncf %123 : vector<5x8xf32> to vector<5x8xbf16>
    %125 = arith.index_cast %c0_i32 : i32 to index
    %c0_62 = arith.constant 0 : index
    %c0_63 = arith.constant 0 : index
    %126 = vector.load %arg18[%125, %c0_62, %c0_63] : memref<1x5x32xbf16, #tpu.memory_space<vmem>>, vector<1x5x8xbf16>
    %127 = vector.shape_cast %126 : vector<1x5x8xbf16> to vector<5x8xbf16>
    %128 = vector.shape_cast %124 : vector<5x8xbf16> to vector<1x5x8xbf16>
    tpu.vector_store %arg18[%125, %c0_62, %c0_63], %128 {strides = array<i32>} : memref<1x5x32xbf16, #tpu.memory_space<vmem>>, vector<1x5x8xbf16>,
    %129 = vector.extract_strided_slice %121 {offsets = [1, 0, 0], sizes = [1, 5, 8], strides = [1, 1, 1]} : vector<4x5x8xf32> to vector<1x5x8xf32>
    %130 = vector.shape_cast %129 : vector<1x5x8xf32> to vector<5x8xf32>
    %131 = arith.truncf %130 : vector<5x8xf32> to vector<5x8xbf16>
    %132 = arith.index_cast %c0_i32 : i32 to index
    %c0_64 = arith.constant 0 : index
    %c8 = arith.constant 8 : index
    %133 = vector.load %arg18[%132, %c0_64, %c8] : memref<1x5x32xbf16, #tpu.memory_space<vmem>>, vector<1x5x8xbf16>
    %134 = vector.shape_cast %133 : vector<1x5x8xbf16> to vector<5x8xbf16>
    %135 = vector.shape_cast %131 : vector<5x8xbf16> to vector<1x5x8xbf16>
    tpu.vector_store %arg18[%132, %c0_64, %c8], %135 {strides = array<i32>} : memref<1x5x32xbf16, #tpu.memory_space<vmem>>, vector<1x5x8xbf16>,
    %136 = vector.extract_strided_slice %121 {offsets = [2, 0, 0], sizes = [1, 5, 8], strides = [1, 1, 1]} : vector<4x5x8xf32> to vector<1x5x8xf32>
    %137 = vector.shape_cast %136 : vector<1x5x8xf32> to vector<5x8xf32>
    %138 = arith.truncf %137 : vector<5x8xf32> to vector<5x8xbf16>
    %139 = arith.index_cast %c0_i32 : i32 to index
    %c0_65 = arith.constant 0 : index
    %c16 = arith.constant 16 : index
    %140 = vector.load %arg18[%139, %c0_65, %c16] : memref<1x5x32xbf16, #tpu.memory_space<vmem>>, vector<1x5x8xbf16>
    %141 = vector.shape_cast %140 : vector<1x5x8xbf16> to vector<5x8xbf16>
    %142 = vector.shape_cast %138 : vector<5x8xbf16> to vector<1x5x8xbf16>
    tpu.vector_store %arg18[%139, %c0_65, %c16], %142 {strides = array<i32>} : memref<1x5x32xbf16, #tpu.memory_space<vmem>>, vector<1x5x8xbf16>,
    %143 = vector.extract_strided_slice %121 {offsets = [3, 0, 0], sizes = [1, 5, 8], strides = [1, 1, 1]} : vector<4x5x8xf32> to vector<1x5x8xf32>
    %144 = vector.shape_cast %143 : vector<1x5x8xf32> to vector<5x8xf32>
    %145 = arith.truncf %144 : vector<5x8xf32> to vector<5x8xbf16>
    %146 = arith.index_cast %c0_i32 : i32 to index
    %c0_66 = arith.constant 0 : index
    %c24 = arith.constant 24 : index
    %147 = vector.load %arg18[%146, %c0_66, %c24] : memref<1x5x32xbf16, #tpu.memory_space<vmem>>, vector<1x5x8xbf16>
    %148 = vector.shape_cast %147 : vector<1x5x8xbf16> to vector<5x8xbf16>
    %149 = vector.shape_cast %145 : vector<5x8xbf16> to vector<1x5x8xbf16>
    tpu.vector_store %arg18[%146, %c0_66, %c24], %149 {strides = array<i32>} : memref<1x5x32xbf16, #tpu.memory_space<vmem>>, vector<1x5x8xbf16>,
    %c1_i32 = arith.constant 1 : i32
    %cst_67 = arith.constant 0.000000e+00 : f32
    %150 = vector.broadcast %cst_67 : f32 to vector<5x32xf32>
    %c0_68 = arith.constant 0 : index
    %c0_69 = arith.constant 0 : index
    %c0_70 = arith.constant 0 : index
    %151 = vector.load %arg18[%c0_68, %c0_69, %c0_70] : memref<1x5x32xbf16, #tpu.memory_space<vmem>>, vector<1x5x32xbf16>
    %152 = vector.shape_cast %151 : vector<1x5x32xbf16> to vector<5x32xbf16>
    %c0_71 = arith.constant 0 : index
    %c0_72 = arith.constant 0 : index
    %c0_73 = arith.constant 0 : index
    %153 = vector.load %arg6[%c0_71, %c0_72, %c0_73] : memref<1x32x32xbf16, #tpu.memory_space<vmem>>, vector<1x32x32xbf16>
    %154 = vector.shape_cast %153 : vector<1x32x32xbf16> to vector<32x32xbf16>
    %cst_74 = arith.constant dense<0.000000e+00> : vector<5x32xf32>
    %155 = tpu.matmul %152, %154, %cst_74 {dimension_numbers = #tpu.dot_dimension_numbers<[1], [0], [0], [1], [0, 0, 1, 1], [], []>} : vector<5x32xbf16>, vector<32x32xbf16>, vector<5x32xf32> -> vector<5x32xf32>
    %156 = arith.addf %150, %155 : vector<5x32xf32>
    %157 = arith.addf %2, %156 : vector<5x32xf32>
    %c0_75 = arith.constant 0 : index
    %c0_76 = arith.constant 0 : index
    %158 = vector.load %arg7[%c0_75, %c0_76] : memref<1x32xf32, #tpu.memory_space<vmem>>, vector<1x32xf32>
    %159 = vector.broadcast %158 : vector<1x32xf32> to vector<5x32xf32>
    %160 = arith.addf %157, %159 : vector<5x32xf32>
    %c0_77 = arith.constant 0 : index
    %c0_78 = arith.constant 0 : index
    %161 = vector.load %arg8[%c0_77, %c0_78] : memref<1x32xf32, #tpu.memory_space<vmem>>, vector<1x32xf32>
    %c0_79 = arith.constant 0 : index
    %c0_80 = arith.constant 0 : index
    %162 = vector.load %arg9[%c0_79, %c0_80] : memref<1x32xf32, #tpu.memory_space<vmem>>, vector<1x32xf32>
    %cst_81 = arith.constant dense<0.000000e+00> : vector<5xf32>
    %163 = vector.multi_reduction <add>, %160, %cst_81 [1] : vector<5x32xf32> to vector<5xf32>
    %164 = vector.shape_cast %163 : vector<5xf32> to vector<5x1xf32>
    %cst_82 = arith.constant 3.200000e+01 : f32
    %165 = vector.broadcast %cst_82 : f32 to vector<5x1xf32>
    %166 = arith.divf %164, %165 : vector<5x1xf32>
    %167 = vector.broadcast %166 : vector<5x1xf32> to vector<5x32xf32>
    %168 = arith.subf %160, %167 : vector<5x32xf32>
    %169 = arith.mulf %168, %168 : vector<5x32xf32>
    %cst_83 = arith.constant dense<0.000000e+00> : vector<5xf32>
    %170 = vector.multi_reduction <add>, %169, %cst_83 [1] : vector<5x32xf32> to vector<5xf32>
    %171 = vector.shape_cast %170 : vector<5xf32> to vector<5x1xf32>
    %cst_84 = arith.constant 3.200000e+01 : f32
    %172 = vector.broadcast %cst_84 : f32 to vector<5x1xf32>
    %173 = arith.divf %171, %172 : vector<5x1xf32>
    %174 = vector.broadcast %166 : vector<5x1xf32> to vector<5x32xf32>
    %175 = arith.subf %160, %174 : vector<5x32xf32>
    %cst_85 = arith.constant 9.99999974E-6 : f32
    %176 = vector.broadcast %cst_85 : f32 to vector<5x1xf32>
    %177 = arith.addf %173, %176 : vector<5x1xf32>
    %178 = math.rsqrt %177 : vector<5x1xf32>
    %179 = vector.broadcast %178 : vector<5x1xf32> to vector<5x32xf32>
    %180 = arith.mulf %175, %179 : vector<5x32xf32>
    %181 = vector.broadcast %161 : vector<1x32xf32> to vector<5x32xf32>
    %182 = arith.mulf %180, %181 : vector<5x32xf32>
    %183 = vector.broadcast %162 : vector<1x32xf32> to vector<5x32xf32>
    %184 = arith.addf %182, %183 : vector<5x32xf32>
    %185 = arith.truncf %184 : vector<5x32xf32> to vector<5x32xbf16>
    %cst_86 = arith.constant 0.000000e+00 : f32
    %186 = vector.broadcast %cst_86 : f32 to vector<5x32xf32>
    %c0_i32_87 = arith.constant 0 : i32
    %187 = arith.index_cast %c0_i32_87 : i32 to index
    %c0_88 = arith.constant 0 : index
    %c0_89 = arith.constant 0 : index
    %188 = vector.load %arg10[%187, %c0_88, %c0_89] : memref<1x32x128xbf16, #tpu.memory_space<vmem>>, vector<1x32x128xbf16>
    %189 = vector.shape_cast %188 : vector<1x32x128xbf16> to vector<32x128xbf16>
    %cst_90 = arith.constant dense<0.000000e+00> : vector<5x128xf32>
    %190 = tpu.matmul %185, %189, %cst_90 {dimension_numbers = #tpu.dot_dimension_numbers<[1], [0], [0], [1], [0, 0, 1, 1], [], []>} : vector<5x32xbf16>, vector<32x128xbf16>, vector<5x128xf32> -> vector<5x128xf32>
    %191 = arith.index_cast %c0_i32_87 : i32 to index
    %c0_91 = arith.constant 0 : index
    %c0_92 = arith.constant 0 : index
    %192 = vector.load %arg11[%191, %c0_91, %c0_92] : memref<1x1x128xf32, #tpu.memory_space<vmem>>, vector<1x1x128xf32>
    %193 = vector.shape_cast %192 : vector<1x1x128xf32> to vector<1x128xf32>
    %194 = vector.broadcast %193 : vector<1x128xf32> to vector<5x128xf32>
    %195 = arith.addf %190, %194 : vector<5x128xf32>
    %cst_93 = arith.constant 1.702000e+00 : f32
    %196 = vector.broadcast %cst_93 : f32 to vector<5x128xf32>
    %197 = arith.mulf %196, %195 : vector<5x128xf32>
    %198 = arith.negf %197 : vector<5x128xf32>
    %199 = math.exp %198 : vector<5x128xf32>
    %cst_94 = arith.constant 1.000000e+00 : f32
    %200 = vector.broadcast %cst_94 : f32 to vector<5x128xf32>
    %201 = arith.addf %200, %199 : vector<5x128xf32>
    %202 = arith.divf %200, %201 : vector<5x128xf32>
    %203 = arith.mulf %195, %202 : vector<5x128xf32>
    %204 = arith.truncf %203 : vector<5x128xf32> to vector<5x128xbf16>
    %205 = arith.index_cast %c0_i32_87 : i32 to index
    %c0_95 = arith.constant 0 : index
    %c0_96 = arith.constant 0 : index
    %206 = vector.load %arg12[%205, %c0_95, %c0_96] : memref<1x128x32xbf16, #tpu.memory_space<vmem>>, vector<1x128x32xbf16>
    %207 = vector.shape_cast %206 : vector<1x128x32xbf16> to vector<128x32xbf16>
    %cst_97 = arith.constant dense<0.000000e+00> : vector<5x32xf32>
    %208 = tpu.matmul %204, %207, %cst_97 {dimension_numbers = #tpu.dot_dimension_numbers<[1], [0], [0], [1], [0, 0, 1, 1], [], []>} : vector<5x128xbf16>, vector<128x32xbf16>, vector<5x32xf32> -> vector<5x32xf32>
    %209 = arith.addf %186, %208 : vector<5x32xf32>
    %c1_i32_98 = arith.constant 1 : i32
    %210 = arith.addf %160, %209 : vector<5x32xf32>
    %c0_99 = arith.constant 0 : index
    %c0_100 = arith.constant 0 : index
    %211 = vector.load %arg13[%c0_99, %c0_100] : memref<1x32xf32, #tpu.memory_space<vmem>>, vector<1x32xf32>
    %212 = vector.broadcast %211 : vector<1x32xf32> to vector<5x32xf32>
    %213 = arith.addf %210, %212 : vector<5x32xf32>
    %214 = arith.truncf %213 : vector<5x32xf32> to vector<5x32xbf16>
    %c0_101 = arith.constant 0 : index
    %c0_102 = arith.constant 0 : index
    %c0_103 = arith.constant 0 : index
    %215 = vector.load %arg14[%c0_101, %c0_102, %c0_103] : memref<1x5x32xbf16, #tpu.memory_space<vmem>>, vector<1x5x32xbf16>
    %216 = vector.shape_cast %215 : vector<1x5x32xbf16> to vector<5x32xbf16>
    %217 = vector.shape_cast %214 : vector<5x32xbf16> to vector<1x5x32xbf16>
    tpu.vector_store %arg14[%c0_101, %c0_102, %c0_103], %217 {strides = array<i32>} : memref<1x5x32xbf16, #tpu.memory_space<vmem>>, vector<1x5x32xbf16>,
    return
  }
  func.func @transform_0(%arg0: i32) -> (i32, i32, i32) {
    %c0_i32 = arith.constant 0 : i32
    %c0_i32_0 = arith.constant 0 : i32
    %c0_i32_1 = arith.constant 0 : i32
    return %arg0, %c0_i32, %c0_i32_0 : i32, i32, i32
  }
  func.func @transform_1(%arg0: i32) -> (i32, i32) {
    %c0_i32 = arith.constant 0 : i32
    %c0_i32_0 = arith.constant 0 : i32
    %c0_i32_1 = arith.constant 0 : i32
    return %c0_i32, %c0_i32_0 : i32, i32
  }
  func.func @transform_2(%arg0: i32) -> (i32, i32) {
    %c0_i32 = arith.constant 0 : i32
    %c0_i32_0 = arith.constant 0 : i32
    %c0_i32_1 = arith.constant 0 : i32
    return %c0_i32, %c0_i32_0 : i32, i32
  }
  func.func @transform_3(%arg0: i32) -> (i32, i32) {
    %c0_i32 = arith.constant 0 : i32
    %c0_i32_0 = arith.constant 0 : i32
    %c0_i32_1 = arith.constant 0 : i32
    return %c0_i32, %c0_i32_0 : i32, i32
  }
  func.func @transform_4(%arg0: i32) -> (i32, i32) {
    %c0_i32 = arith.constant 0 : i32
    %c0_i32_0 = arith.constant 0 : i32
    %c0_i32_1 = arith.constant 0 : i32
    return %c0_i32, %c0_i32_0 : i32, i32
  }
  func.func @transform_5(%arg0: i32) -> (i32, i32, i32) {
    %c0_i32 = arith.constant 0 : i32
    %c0_i32_0 = arith.constant 0 : i32
    %c0_i32_1 = arith.constant 0 : i32
    %c0_i32_2 = arith.constant 0 : i32
    return %c0_i32, %c0_i32_0, %c0_i32_1 : i32, i32, i32
  }
  func.func @transform_6(%arg0: i32) -> (i32, i32) {
    %c0_i32 = arith.constant 0 : i32
    %c0_i32_0 = arith.constant 0 : i32
    %c0_i32_1 = arith.constant 0 : i32
    return %c0_i32, %c0_i32_0 : i32, i32
  }
  func.func @transform_7(%arg0: i32) -> (i32, i32) {
    %c0_i32 = arith.constant 0 : i32
    %c0_i32_0 = arith.constant 0 : i32
    %c0_i32_1 = arith.constant 0 : i32
    return %c0_i32, %c0_i32_0 : i32, i32
  }
  func.func @transform_8(%arg0: i32) -> (i32, i32) {
    %c0_i32 = arith.constant 0 : i32
    %c0_i32_0 = arith.constant 0 : i32
    %c0_i32_1 = arith.constant 0 : i32
    return %c0_i32, %c0_i32_0 : i32, i32
  }
  func.func @transform_9(%arg0: i32) -> (i32, i32, i32) {
    %c0_i32 = arith.constant 0 : i32
    %c0_i32_0 = arith.constant 0 : i32
    %c0_i32_1 = arith.constant 0 : i32
    %c0_i32_2 = arith.constant 0 : i32
    return %c0_i32, %c0_i32_0, %c0_i32_1 : i32, i32, i32
  }
  func.func @transform_10(%arg0: i32) -> (i32, i32, i32) {
    %c0_i32 = arith.constant 0 : i32
    %c0_i32_0 = arith.constant 0 : i32
    %c0_i32_1 = arith.constant 0 : i32
    %c0_i32_2 = arith.constant 0 : i32
    return %c0_i32, %c0_i32_0, %c0_i32_1 : i32, i32, i32
  }
  func.func @transform_11(%arg0: i32) -> (i32, i32, i32) {
    %c0_i32 = arith.constant 0 : i32
    %c0_i32_0 = arith.constant 0 : i32
    %c0_i32_1 = arith.constant 0 : i32
    %c0_i32_2 = arith.constant 0 : i32
    return %c0_i32, %c0_i32_0, %c0_i32_1 : i32, i32, i32
  }
  func.func @transform_12(%arg0: i32) -> (i32, i32) {
    %c0_i32 = arith.constant 0 : i32
    %c0_i32_0 = arith.constant 0 : i32
    %c0_i32_1 = arith.constant 0 : i32
    return %c0_i32, %c0_i32_0 : i32, i32
  }
  func.func @transform_13(%arg0: i32) -> (i32, i32, i32) {
    %c0_i32 = arith.constant 0 : i32
    %c0_i32_0 = arith.constant 0 : i32
    %c0_i32_1 = arith.constant 0 : i32
    return %arg0, %c0_i32, %c0_i32_0 : i32, i32, i32
  }
}

module attributes {stable_mosaic.version = 11 : i64} {
  func.func @patch_embed_kernel(%arg0: i32, %arg1: memref<1x4x192xbf16, #tpu.memory_space<vmem>>, %arg2: memref<192x32xbf16, #tpu.memory_space<vmem>>, %arg3: memref<1x32xf32, #tpu.memory_space<vmem>>, %arg4: memref<5x32xf32, #tpu.memory_space<vmem>>, %arg5: memref<1x32xf32, #tpu.memory_space<vmem>>, %arg6: memref<1x32xf32, #tpu.memory_space<vmem>>, %arg7: memref<1x5x32xbf16, #tpu.memory_space<vmem>>) attributes {dimension_semantics = [#tpu.dimension_semantics<parallel>], iteration_bounds = array<i64: 2>, scalar_prefetch = 0 : i64, scratch_operands = 0 : i64, tpu.core_type = #tpu.core_type<tc>, window_params = [{transform_indices = @transform_0, window_bounds = array<i64: 1, 4, 192>}, {pipeline_mode = #tpu.pipeline_mode<synchronous>, transform_indices = @transform_1, window_bounds = array<i64: 192, 32>}, {pipeline_mode = #tpu.pipeline_mode<synchronous>, transform_indices = @transform_2, window_bounds = array<i64: 1, 32>}, {pipeline_mode = #tpu.pipeline_mode<synchronous>, transform_indices = @transform_3, window_bounds = array<i64: 5, 32>}, {pipeline_mode = #tpu.pipeline_mode<synchronous>, transform_indices = @transform_4, window_bounds = array<i64: 1, 32>}, {pipeline_mode = #tpu.pipeline_mode<synchronous>, transform_indices = @transform_5, window_bounds = array<i64: 1, 32>}, {transform_indices = @transform_6, window_bounds = array<i64: 1, 5, 32>}]} {
    %c0 = arith.constant 0 : index
    %c0_0 = arith.constant 0 : index
    %c0_1 = arith.constant 0 : index
    %0 = vector.load %arg1[%c0, %c0_0, %c0_1] : memref<1x4x192xbf16, #tpu.memory_space<vmem>>, vector<1x4x192xbf16>
    %1 = vector.shape_cast %0 : vector<1x4x192xbf16> to vector<4x192xbf16>
    %c0_2 = arith.constant 0 : index
    %c0_3 = arith.constant 0 : index
    %2 = vector.load %arg2[%c0_2, %c0_3] : memref<192x32xbf16, #tpu.memory_space<vmem>>, vector<192x32xbf16>
    %cst = arith.constant dense<0.000000e+00> : vector<4x32xf32>
    %3 = tpu.matmul %1, %2, %cst {dimension_numbers = #tpu.dot_dimension_numbers<[1], [0], [0], [1], [0, 0, 1, 1], [], []>} : vector<4x192xbf16>, vector<192x32xbf16>, vector<4x32xf32> -> vector<4x32xf32>
    %c0_4 = arith.constant 0 : index
    %c0_5 = arith.constant 0 : index
    %4 = vector.load %arg4[%c0_4, %c0_5] : memref<5x32xf32, #tpu.memory_space<vmem>>, vector<5x32xf32>
    %c0_6 = arith.constant 0 : index
    %c0_7 = arith.constant 0 : index
    %5 = vector.load %arg5[%c0_6, %c0_7] : memref<1x32xf32, #tpu.memory_space<vmem>>, vector<1x32xf32>
    %c0_8 = arith.constant 0 : index
    %c0_9 = arith.constant 0 : index
    %6 = vector.load %arg6[%c0_8, %c0_9] : memref<1x32xf32, #tpu.memory_space<vmem>>, vector<1x32xf32>
    %c0_10 = arith.constant 0 : index
    %c0_11 = arith.constant 0 : index
    %7 = vector.load %arg3[%c0_10, %c0_11] : memref<1x32xf32, #tpu.memory_space<vmem>>, vector<1x32xf32>
    %8 = vector.extract_strided_slice %4 {offsets = [0, 0], sizes = [1, 32], strides = [1, 1]} : vector<5x32xf32> to vector<1x32xf32>
    %9 = arith.addf %7, %8 : vector<1x32xf32>
    %cst_12 = arith.constant dense<0.000000e+00> : vector<1xf32>
    %10 = vector.multi_reduction <add>, %9, %cst_12 [1] : vector<1x32xf32> to vector<1xf32>
    %11 = vector.shape_cast %10 : vector<1xf32> to vector<1x1xf32>
    %cst_13 = arith.constant 3.200000e+01 : f32
    %12 = vector.broadcast %cst_13 : f32 to vector<1x1xf32>
    %13 = arith.divf %11, %12 : vector<1x1xf32>
    %14 = vector.broadcast %13 : vector<1x1xf32> to vector<1x32xf32>
    %15 = arith.subf %9, %14 : vector<1x32xf32>
    %16 = arith.mulf %15, %15 : vector<1x32xf32>
    %cst_14 = arith.constant dense<0.000000e+00> : vector<1xf32>
    %17 = vector.multi_reduction <add>, %16, %cst_14 [1] : vector<1x32xf32> to vector<1xf32>
    %18 = vector.shape_cast %17 : vector<1xf32> to vector<1x1xf32>
    %cst_15 = arith.constant 3.200000e+01 : f32
    %19 = vector.broadcast %cst_15 : f32 to vector<1x1xf32>
    %20 = arith.divf %18, %19 : vector<1x1xf32>
    %21 = vector.broadcast %13 : vector<1x1xf32> to vector<1x32xf32>
    %22 = arith.subf %9, %21 : vector<1x32xf32>
    %cst_16 = arith.constant 9.99999974E-6 : f32
    %23 = vector.broadcast %cst_16 : f32 to vector<1x1xf32>
    %24 = arith.addf %20, %23 : vector<1x1xf32>
    %25 = math.rsqrt %24 : vector<1x1xf32>
    %26 = vector.broadcast %25 : vector<1x1xf32> to vector<1x32xf32>
    %27 = arith.mulf %22, %26 : vector<1x32xf32>
    %28 = arith.mulf %27, %5 : vector<1x32xf32>
    %29 = arith.addf %28, %6 : vector<1x32xf32>
    %30 = arith.truncf %29 : vector<1x32xf32> to vector<1x32xbf16>
    %c0_17 = arith.constant 0 : index
    %c0_18 = arith.constant 0 : index
    %c0_19 = arith.constant 0 : index
    %31 = vector.load %arg7[%c0_17, %c0_18, %c0_19] : memref<1x5x32xbf16, #tpu.memory_space<vmem>>, vector<1x1x32xbf16>
    %32 = vector.shape_cast %31 : vector<1x1x32xbf16> to vector<1x32xbf16>
    %33 = vector.shape_cast %30 : vector<1x32xbf16> to vector<1x1x32xbf16>
    tpu.vector_store %arg7[%c0_17, %c0_18, %c0_19], %33 {strides = array<i32>} : memref<1x5x32xbf16, #tpu.memory_space<vmem>>, vector<1x1x32xbf16>,
    %34 = vector.extract_strided_slice %4 {offsets = [1, 0], sizes = [4, 32], strides = [1, 1]} : vector<5x32xf32> to vector<4x32xf32>
    %35 = arith.addf %3, %34 : vector<4x32xf32>
    %cst_20 = arith.constant dense<0.000000e+00> : vector<4xf32>
    %36 = vector.multi_reduction <add>, %35, %cst_20 [1] : vector<4x32xf32> to vector<4xf32>
    %37 = vector.shape_cast %36 : vector<4xf32> to vector<4x1xf32>
    %cst_21 = arith.constant 3.200000e+01 : f32
    %38 = vector.broadcast %cst_21 : f32 to vector<4x1xf32>
    %39 = arith.divf %37, %38 : vector<4x1xf32>
    %40 = vector.broadcast %39 : vector<4x1xf32> to vector<4x32xf32>
    %41 = arith.subf %35, %40 : vector<4x32xf32>
    %42 = arith.mulf %41, %41 : vector<4x32xf32>
    %cst_22 = arith.constant dense<0.000000e+00> : vector<4xf32>
    %43 = vector.multi_reduction <add>, %42, %cst_22 [1] : vector<4x32xf32> to vector<4xf32>
    %44 = vector.shape_cast %43 : vector<4xf32> to vector<4x1xf32>
    %cst_23 = arith.constant 3.200000e+01 : f32
    %45 = vector.broadcast %cst_23 : f32 to vector<4x1xf32>
    %46 = arith.divf %44, %45 : vector<4x1xf32>
    %47 = vector.broadcast %39 : vector<4x1xf32> to vector<4x32xf32>
    %48 = arith.subf %35, %47 : vector<4x32xf32>
    %cst_24 = arith.constant 9.99999974E-6 : f32
    %49 = vector.broadcast %cst_24 : f32 to vector<4x1xf32>
    %50 = arith.addf %46, %49 : vector<4x1xf32>
    %51 = math.rsqrt %50 : vector<4x1xf32>
    %52 = vector.broadcast %51 : vector<4x1xf32> to vector<4x32xf32>
    %53 = arith.mulf %48, %52 : vector<4x32xf32>
    %54 = vector.broadcast %5 : vector<1x32xf32> to vector<4x32xf32>
    %55 = arith.mulf %53, %54 : vector<4x32xf32>
    %56 = vector.broadcast %6 : vector<1x32xf32> to vector<4x32xf32>
    %57 = arith.addf %55, %56 : vector<4x32xf32>
    %58 = arith.truncf %57 : vector<4x32xf32> to vector<4x32xbf16>
    %c0_25 = arith.constant 0 : index
    %c1 = arith.constant 1 : index
    %c0_26 = arith.constant 0 : index
    %59 = vector.load %arg7[%c0_25, %c1, %c0_26] : memref<1x5x32xbf16, #tpu.memory_space<vmem>>, vector<1x4x32xbf16>
    %60 = vector.shape_cast %59 : vector<1x4x32xbf16> to vector<4x32xbf16>
    %61 = vector.shape_cast %58 : vector<4x32xbf16> to vector<1x4x32xbf16>
    tpu.vector_store %arg7[%c0_25, %c1, %c0_26], %61 {strides = array<i32>} : memref<1x5x32xbf16, #tpu.memory_space<vmem>>, vector<1x4x32xbf16>,
    return
  }
  func.func @transform_0(%arg0: i32) -> (i32, i32, i32) {
    %c0_i32 = arith.constant 0 : i32
    %c0_i32_0 = arith.constant 0 : i32
    %c0_i32_1 = arith.constant 0 : i32
    return %arg0, %c0_i32, %c0_i32_0 : i32, i32, i32
  }
  func.func @transform_1(%arg0: i32) -> (i32, i32) {
    %c0_i32 = arith.constant 0 : i32
    %c0_i32_0 = arith.constant 0 : i32
    %c0_i32_1 = arith.constant 0 : i32
    return %c0_i32, %c0_i32_0 : i32, i32
  }
  func.func @transform_2(%arg0: i32) -> (i32, i32) {
    %c0_i32 = arith.constant 0 : i32
    %c0_i32_0 = arith.constant 0 : i32
    %c0_i32_1 = arith.constant 0 : i32
    return %c0_i32, %c0_i32_0 : i32, i32
  }
  func.func @transform_3(%arg0: i32) -> (i32, i32) {
    %c0_i32 = arith.constant 0 : i32
    %c0_i32_0 = arith.constant 0 : i32
    %c0_i32_1 = arith.constant 0 : i32
    return %c0_i32, %c0_i32_0 : i32, i32
  }
  func.func @transform_4(%arg0: i32) -> (i32, i32) {
    %c0_i32 = arith.constant 0 : i32
    %c0_i32_0 = arith.constant 0 : i32
    %c0_i32_1 = arith.constant 0 : i32
    return %c0_i32, %c0_i32_0 : i32, i32
  }
  func.func @transform_5(%arg0: i32) -> (i32, i32) {
    %c0_i32 = arith.constant 0 : i32
    %c0_i32_0 = arith.constant 0 : i32
    %c0_i32_1 = arith.constant 0 : i32
    return %c0_i32, %c0_i32_0 : i32, i32
  }
  func.func @transform_6(%arg0: i32) -> (i32, i32, i32) {
    %c0_i32 = arith.constant 0 : i32
    %c0_i32_0 = arith.constant 0 : i32
    %c0_i32_1 = arith.constant 0 : i32
    return %arg0, %c0_i32, %c0_i32_0 : i32, i32, i32
  }
}

module attributes {stable_mosaic.version = 11 : i64} {
  func.func @ln_post_kernel(%arg0: i32, %arg1: memref<1x5x32xbf16, #tpu.memory_space<vmem>>, %arg2: memref<1x32xf32, #tpu.memory_space<vmem>>, %arg3: memref<1x32xf32, #tpu.memory_space<vmem>>, %arg4: memref<1x5x32xf32, #tpu.memory_space<vmem>>) attributes {dimension_semantics = [#tpu.dimension_semantics<parallel>], iteration_bounds = array<i64: 2>, scalar_prefetch = 0 : i64, scratch_operands = 0 : i64, tpu.core_type = #tpu.core_type<tc>, window_params = [{transform_indices = @transform_0, window_bounds = array<i64: 1, 5, 32>}, {pipeline_mode = #tpu.pipeline_mode<synchronous>, transform_indices = @transform_1, window_bounds = array<i64: 1, 32>}, {pipeline_mode = #tpu.pipeline_mode<synchronous>, transform_indices = @transform_2, window_bounds = array<i64: 1, 32>}, {transform_indices = @transform_3, window_bounds = array<i64: 1, 5, 32>}]} {
    %c0 = arith.constant 0 : index
    %c0_0 = arith.constant 0 : index
    %c0_1 = arith.constant 0 : index
    %0 = vector.load %arg1[%c0, %c0_0, %c0_1] : memref<1x5x32xbf16, #tpu.memory_space<vmem>>, vector<1x5x32xbf16>
    %1 = vector.shape_cast %0 : vector<1x5x32xbf16> to vector<5x32xbf16>
    %c0_2 = arith.constant 0 : index
    %c0_3 = arith.constant 0 : index
    %2 = vector.load %arg2[%c0_2, %c0_3] : memref<1x32xf32, #tpu.memory_space<vmem>>, vector<1x32xf32>
    %c0_4 = arith.constant 0 : index
    %c0_5 = arith.constant 0 : index
    %3 = vector.load %arg3[%c0_4, %c0_5] : memref<1x32xf32, #tpu.memory_space<vmem>>, vector<1x32xf32>
    %4 = arith.extf %1 : vector<5x32xbf16> to vector<5x32xf32>
    %cst = arith.constant dense<0.000000e+00> : vector<5xf32>
    %5 = vector.multi_reduction <add>, %4, %cst [1] : vector<5x32xf32> to vector<5xf32>
    %6 = vector.shape_cast %5 : vector<5xf32> to vector<5x1xf32>
    %cst_6 = arith.constant 3.200000e+01 : f32
    %7 = vector.broadcast %cst_6 : f32 to vector<5x1xf32>
    %8 = arith.divf %6, %7 : vector<5x1xf32>
    %9 = vector.broadcast %8 : vector<5x1xf32> to vector<5x32xf32>
    %10 = arith.subf %4, %9 : vector<5x32xf32>
    %11 = arith.mulf %10, %10 : vector<5x32xf32>
    %cst_7 = arith.constant dense<0.000000e+00> : vector<5xf32>
    %12 = vector.multi_reduction <add>, %11, %cst_7 [1] : vector<5x32xf32> to vector<5xf32>
    %13 = vector.shape_cast %12 : vector<5xf32> to vector<5x1xf32>
    %cst_8 = arith.constant 3.200000e+01 : f32
    %14 = vector.broadcast %cst_8 : f32 to vector<5x1xf32>
    %15 = arith.divf %13, %14 : vector<5x1xf32>
    %16 = vector.broadcast %8 : vector<5x1xf32> to vector<5x32xf32>
    %17 = arith.subf %4, %16 : vector<5x32xf32>
    %cst_9 = arith.constant 9.99999974E-6 : f32
    %18 = vector.broadcast %cst_9 : f32 to vector<5x1xf32>
    %19 = arith.addf %15, %18 : vector<5x1xf32>
    %20 = math.rsqrt %19 : vector<5x1xf32>
    %21 = vector.broadcast %20 : vector<5x1xf32> to vector<5x32xf32>
    %22 = arith.mulf %17, %21 : vector<5x32xf32>
    %23 = vector.broadcast %2 : vector<1x32xf32> to vector<5x32xf32>
    %24 = arith.mulf %22, %23 : vector<5x32xf32>
    %25 = vector.broadcast %3 : vector<1x32xf32> to vector<5x32xf32>
    %26 = arith.addf %24, %25 : vector<5x32xf32>
    %c0_10 = arith.constant 0 : index
    %c0_11 = arith.constant 0 : index
    %c0_12 = arith.constant 0 : index
    %27 = vector.load %arg4[%c0_10, %c0_11, %c0_12] : memref<1x5x32xf32, #tpu.memory_space<vmem>>, vector<1x5x32xf32>
    %28 = vector.shape_cast %27 : vector<1x5x32xf32> to vector<5x32xf32>
    %29 = vector.shape_cast %26 : vector<5x32xf32> to vector<1x5x32xf32>
    tpu.vector_store %arg4[%c0_10, %c0_11, %c0_12], %29 {strides = array<i32>} : memref<1x5x32xf32, #tpu.memory_space<vmem>>, vector<1x5x32xf32>,
    return
  }
  func.func @transform_0(%arg0: i32) -> (i32, i32, i32) {
    %c0_i32 = arith.constant 0 : i32
    %c0_i32_0 = arith.constant 0 : i32
    %c0_i32_1 = arith.constant 0 : i32
    return %arg0, %c0_i32, %c0_i32_0 : i32, i32, i32
  }
  func.func @transform_1(%arg0: i32) -> (i32, i32) {
    %c0_i32 = arith.constant 0 : i32
    %c0_i32_0 = arith.constant 0 : i32
    %c0_i32_1 = arith.constant 0 : i32
    return %c0_i32, %c0_i32_0 : i32, i32
  }
  func.func @transform_2(%arg0: i32) -> (i32, i32) {
    %c0_i32 = arith.constant 0 : i32
    %c0_i32_0 = arith.constant 0 : i32
    %c0_i32_1 = arith.constant 0 : i32
    return %c0_i32, %c0_i32_0 : i32, i32
  }
  func.func @transform_3(%arg0: i32) -> (i32, i32, i32) {
    %c0_i32 = arith.constant 0 : i32
    %c0_i32_0 = arith.constant 0 : i32
    %c0_i32_1 = arith.constant 0 : i32
    return %arg0, %c0_i32, %c0_i32_0 : i32, i32, i32
  }
}

</mosaic_0001>

<llo_original>
// kernel: tpu_custom_call.1
$region0: #{tpu_custom_call.1}
  #allocation0 [shape = 'u32[]', space=smem, size = 0x4, offset = 0x4, fixed_abs, tag = 'smem constant byte address 0x4 - core index']
  #allocation1 [shape = 'u32[72,128]{1,0:T(1,128)}', space=vmem, size = 0x9000, scoped, tag = 'internal scratch']
  %s0 = inlined_call_operand.hbm [shape: f32[8,128], index: 0, kind: input, shape index: {}]
  %s1 = inlined_call_operand.hbm [shape: f32[16,128], index: 1, kind: input, shape index: {}]
  %s2 = inlined_call_operand.hbm [shape: f32[16,128], index: 2, kind: output, shape index: {}]
  %s3 = sld [smem:[#allocation0]]
  $region49: #{tpu_custom_call.1} parent=0
    _
  %s5 = ssub.s32 1, %s3
  %s6 = scalar_select 0, %s5, %s3
  $region1: #{tpu_custom_call.1} parent=0
    #allocation2 [shape = 'u8[4096]{0}', space=vmem, size = 0x1000, scoped, tag = 'input window, operand 0, single buffered']
    #allocation3 [shape = 's32[2]{0}', space=sflag, size = 0x8, scoped, tag = 'scoped memory for tpu_custom_call.1']
    #allocation4 [shape = 's32[2]{0}', space=sflag, size = 0x8, scoped, tag = 'scoped memory for tpu_custom_call.1']
    #allocation5 [shape = 'u8[8192]{0}', space=vmem, size = 0x2000, scoped, tag = 'input window, operand 1']
    #allocation6 [shape = 's32[2]{0}', space=sflag, size = 0x8, scoped, tag = 'scoped memory for tpu_custom_call.1']
    #allocation7 [shape = 'u8[8192]{0}', space=vmem, size = 0x2000, scoped, tag = 'output window, operand 0']
    %7 = vsyncpa [#allocation3], 0
    %8 = vsyncpa [#allocation6], 0
    %s9 = scalar_lea.sflag [#allocation6], 1
    %10 = vsyncpa %s9, 0
    %11 = vsyncpa [#allocation4], 0
    %s12 = scalar_lea.sflag [#allocation4], 1
    %13 = vsyncpa %s12, 0
    loop: start=0, step=1, limit=4
    $region2: #{tpu_custom_call.1} parent=1 // loop_pre_header
      _
    $region3: #{tpu_custom_call.1} parent=1 // loop_header
      %s15 = sphi 0, %s19
      %p16 = scmp.ge.s32.totalorder %s15, 4
      %s23 = sphi 0, %s23
      %s25 = sphi 0, %s23
      %s26 = sphi 0, %s25
      %s40 = sphi 0, %s26
      %s46 = sphi 0, %s48
      %s49 = sphi 0, %s46
      %s50 = sphi 0, %s49
      %s66 = sphi 0, %s50
      %s72 = sphi 0, %s74
      %s75 = sphi 0, %s72
      %s76 = sphi 0, %s75
      %s92 = sphi 0, %s76
    $region4: #{tpu_custom_call.1} parent=1 // loop_header_branch
      %18 = sbr.rel (%p16) target = $region8
    $region5: #{tpu_custom_call.1} parent=1 // loop_body
      %s20 = ssub.s32 %s15, 1
      %s21 = ssub.s32 %s15, 2
      %s22 = sadd.s32 %s15, 1
      %s24 = sadd.s32 %s23, 1
      %p27 = scmp.eq.s32.totalorder %s15, 1
      %p28 = scmp.ne.s32.totalorder %s23, %s25
      %p29 = scmp.eq.s32.totalorder %s15, 0
      %p30 = por %p28, %p29
      %p31 = scmp.ne.s32.totalorder %s23, %s25
      %p32 = scmp.eq.s32.totalorder %s20, 1
      %p33 = por %p31, %p32
      %p34 = scmp.ne.s32.totalorder %s25, %s26
      %p35 = scmp.eq.s32.totalorder %s20, 0
      %p36 = por %p34, %p35
      %p37 = scmp.ne.s32.totalorder %s25, %s26
      %p38 = scmp.eq.s32.totalorder %s21, 1
      %p39 = por %p37, %p38
      %p41 = scmp.ne.s32.totalorder %s26, %s40
      %p42 = scmp.eq.s32.totalorder %s21, 0
      %p43 = por %p41, %p42
      %s44 = ssub.s32 %s15, %s22
      %p45 = scmp.eq.s32.totalorder %s44, 0
      %s47 = sadd.s32 %s46, 1
      %s48 = scalar_select %p45, %s46, %s47
      %p51 = pneg %p45
      %p52 = scmp.eq.s32.totalorder %s15, 1
      %p53 = por %p51, %p52
      %p54 = scmp.ne.s32.totalorder %s46, %s49
      %p55 = scmp.eq.s32.totalorder %s15, 0
      %p56 = por %p54, %p55
      %p57 = scmp.ne.s32.totalorder %s46, %s49
      %p58 = scmp.eq.s32.totalorder %s20, 1
      %p59 = por %p57, %p58
      %p60 = scmp.ne.s32.totalorder %s49, %s50
      %p61 = scmp.eq.s32.totalorder %s20, 0
      %p62 = por %p60, %p61
      %p63 = scmp.ne.s32.totalorder %s49, %s50
      %p64 = scmp.eq.s32.totalorder %s21, 1
      %p65 = por %p63, %p64
      %p67 = scmp.ne.s32.totalorder %s50, %s66
      %p68 = scmp.eq.s32.totalorder %s21, 0
      %p69 = por %p67, %p68
      %s70 = ssub.s32 %s15, %s22
      %p71 = scmp.eq.s32.totalorder %s70, 0
      %s73 = sadd.s32 %s72, 1
      %s74 = scalar_select %p71, %s72, %s73
      %p77 = pneg %p71
      %p78 = scmp.eq.s32.totalorder %s15, 1
      %p79 = por %p77, %p78
      %p80 = scmp.ne.s32.totalorder %s72, %s75
      %p81 = scmp.eq.s32.totalorder %s15, 0
      %p82 = por %p80, %p81
      %p83 = scmp.ne.s32.totalorder %s72, %s75
      %p84 = scmp.eq.s32.totalorder %s20, 1
      %p85 = por %p83, %p84
      %p86 = scmp.ne.s32.totalorder %s75, %s76
      %p87 = scmp.eq.s32.totalorder %s20, 0
      %p88 = por %p86, %p87
      %p89 = scmp.ne.s32.totalorder %s75, %s76
      %p90 = scmp.eq.s32.totalorder %s21, 1
      %p91 = por %p89, %p90
      %p93 = scmp.ne.s32.totalorder %s76, %s92
      %p94 = scmp.eq.s32.totalorder %s21, 0
      %p95 = por %p93, %p94
      %p96 = scmp.le.s32.totalorder 1, %s15
      %p97 = scmp.lt.s32.totalorder %s15, 3
      %p98 = pnand %p96, %p97
      %p99 = pneg %p98
      // Predicated region
      $region9: #{tpu_custom_call.1} parent=5 // pred_check
        _
      $region10: #{tpu_custom_call.1} parent=5 // pred_check_branch
        %101 = sbr.rel (%p98) target = $region12
      $region11: #{tpu_custom_call.1} parent=5 // pred_region
        %s102 = ssub.s32 %s15, 1
        // Predicated region
        $region13: #{tpu_custom_call.1} parent=11 // pred_check
          %p103 = pneg %p36
        $region14: #{tpu_custom_call.1} parent=11 // pred_check_branch
          %105 = sbr.rel (%p103) target = $region16
        $region15: #{tpu_custom_call.1} parent=11 // pred_region
          %107 = vsyncadd [#allocation3], 0
          %s109 = sshll.u32 %s0, 4
          %s110 = int_to_ptr.hbm [resolvable:$true] %s109
          %s111 = sshll.u32 [#allocation2], 4
          %s112 = int_to_ptr.vmem [resolvable:$true] %s111
          %114 = dma.hbm_to_vmem [thread:$0]  %s110, 128, %s112, [#allocation3]
        $region16: #{tpu_custom_call.1} parent=11 // pred_fallthru
          _
      $region12: #{tpu_custom_call.1} parent=5 // pred_fallthru
        _
      %p115 = scmp.lt.s32.totalorder %s15, 2
      // Predicated region
      $region17: #{tpu_custom_call.1} parent=5 // pred_check
        %p116 = pneg %p115
      $region18: #{tpu_custom_call.1} parent=5 // pred_check_branch
        %118 = sbr.rel (%p116) target = $region20
      $region19: #{tpu_custom_call.1} parent=5 // pred_region
        // Predicated region
        $region21: #{tpu_custom_call.1} parent=19 // pred_check
          %p119 = pneg %p56
        $region22: #{tpu_custom_call.1} parent=19 // pred_check_branch
          %121 = sbr.rel (%p119) target = $region24
        $region23: #{tpu_custom_call.1} parent=19 // pred_region
          %s122 = sand.u32 %s46, 1
          %s123 = scalar_lea.sflag [#allocation6], %s122
          %s124 = sand.u32 %s46, 1
          %s125 = smul.addr %s124, 8
          %s126 = scalar_lea.vmem [#allocation5], %s125
          %128 = vsyncadd %s123, 0
          %s129 = smul.addr %s15, 8
          %s130 = scalar_lea.hbm %s1, %s129
          %s132 = sshll.u32 %s130, 4
          %s133 = int_to_ptr.hbm [resolvable:$true] %s132
          %s134 = sshll.u32 %s126, 4
          %s135 = int_to_ptr.vmem [resolvable:$true] %s134
          %137 = dma.hbm_to_vmem [thread:$0]  %s133, 128, %s135, %s123
        $region24: #{tpu_custom_call.1} parent=19 // pred_fallthru
          _
      $region20: #{tpu_custom_call.1} parent=5 // pred_fallthru
        _
      %p138 = scmp.le.s32.totalorder 1, %s15
      %p139 = scmp.lt.s32.totalorder %s15, 3
      %p140 = pnand %p138, %p139
      %p141 = pneg %p140
      // Predicated region
      $region25: #{tpu_custom_call.1} parent=5 // pred_check
        _
      $region26: #{tpu_custom_call.1} parent=5 // pred_check_branch
        %143 = sbr.rel (%p140) target = $region28
      $region27: #{tpu_custom_call.1} parent=5 // pred_region
        %s144 = ssub.s32 %s15, 1
        // Predicated region
        $region29: #{tpu_custom_call.1} parent=27 // pred_check
          %p145 = pneg %p36
        $region30: #{tpu_custom_call.1} parent=27 // pred_check_branch
          %147 = sbr.rel (%p145) target = $region32
        $region31: #{tpu_custom_call.1} parent=27 // pred_region
          %149 = dma.done [#allocation3], 128
        $region32: #{tpu_custom_call.1} parent=27 // pred_fallthru
          _
        %s150 = sand.u32 %s49, 1
        %s151 = scalar_lea.sflag [#allocation6], %s150
        %s152 = sand.u32 %s49, 1
        %s153 = smul.addr %s152, 8
        %s154 = scalar_lea.vmem [#allocation5], %s153
        // Predicated region
        $region33: #{tpu_custom_call.1} parent=27 // pred_check
          %p155 = pneg %p62
        $region34: #{tpu_custom_call.1} parent=27 // pred_check_branch
          %157 = sbr.rel (%p155) target = $region36
        $region35: #{tpu_custom_call.1} parent=27 // pred_region
          %159 = dma.done %s151, 128
        $region36: #{tpu_custom_call.1} parent=27 // pred_fallthru
          _
        %p160 = pneg %p36
        %p161 = pneg %p33
        %s162 = sand.u32 %s49, 1
        %s163 = scalar_lea.sflag [#allocation6], %s162
        %s164 = sand.u32 %s49, 1
        %s165 = smul.addr %s164, 8
        %s166 = scalar_lea.vmem [#allocation5], %s165
        %p167 = pneg %p62
        %p168 = pneg %p59
        %p169 = pneg %p88
        %p170 = pneg %p85
        %s171 = sand.u32 %s75, 1
        %s172 = scalar_lea.sflag [#allocation4], %s171
        %s173 = sand.u32 %s75, 1
        %s174 = smul.addr %s173, 8
        %s175 = scalar_lea.vmem [#allocation7], %s174
        %v176 = vld [vmem:[%s154] sm:$0xff]
        %v177 = vld [vmem:[#allocation2] sm:$0xff]
        %v178 = vadd.f32 %v176, %v177
        %179 = vst [vmem:[%s175] sm:$0xff] %v178
        %s180 = sand.u32 %s75, 1
        %s181 = scalar_lea.sflag [#allocation4], %s180
        %s182 = sand.u32 %s75, 1
        %s183 = smul.addr %s182, 8
        %s184 = scalar_lea.vmem [#allocation7], %s183
        // Predicated region
        $region37: #{tpu_custom_call.1} parent=27 // pred_check
          %p185 = pneg %p85
        $region38: #{tpu_custom_call.1} parent=27 // pred_check_branch
          %187 = sbr.rel (%p185) target = $region40
        $region39: #{tpu_custom_call.1} parent=27 // pred_region
          %189 = vsyncadd %s181, 0
          %s190 = smul.addr %s20, 8
          %s191 = scalar_lea.hbm %s2, %s190
          %s193 = sshll.u32 %s184, 4
          %s194 = int_to_ptr.vmem [resolvable:$true] %s193
          %s195 = sshll.u32 %s191, 4
          %s196 = int_to_ptr.hbm [resolvable:$true] %s195
          %198 = dma.vmem_to_hbm [thread:$0]  %s194, 128, %s196, %s181
        $region40: #{tpu_custom_call.1} parent=27 // pred_fallthru
          _
      $region28: #{tpu_custom_call.1} parent=5 // pred_fallthru
        _
      %p199 = scmp.le.s32.totalorder 2, %s15
      // Predicated region
      $region41: #{tpu_custom_call.1} parent=5 // pred_check
        %p200 = pneg %p199
      $region42: #{tpu_custom_call.1} parent=5 // pred_check_branch
        %202 = sbr.rel (%p200) target = $region44
      $region43: #{tpu_custom_call.1} parent=5 // pred_region
        %s203 = ssub.s32 %s15, 2
        // Predicated region
        $region45: #{tpu_custom_call.1} parent=43 // pred_check
          %p204 = pneg %p91
        $region46: #{tpu_custom_call.1} parent=43 // pred_check_branch
          %206 = sbr.rel (%p204) target = $region48
        $region47: #{tpu_custom_call.1} parent=43 // pred_region
          %s207 = sand.u32 %s76, 1
          %s208 = scalar_lea.sflag [#allocation4], %s207
          %s209 = sand.u32 %s76, 1
          %s210 = smul.addr %s209, 8
          %s211 = scalar_lea.vmem [#allocation7], %s210
          %213 = dma.done %s208, 128
        $region48: #{tpu_custom_call.1} parent=43 // pred_fallthru
          _
      $region44: #{tpu_custom_call.1} parent=5 // pred_fallthru
        _
    $region6: #{tpu_custom_call.1} parent=1 // loop_footer
      %s19 = sadd.s32 1, %s15
    $region7: #{tpu_custom_call.1} parent=1 // loop_footer_branch
      %14 = sbr.rel target = $region3
    $region8: #{tpu_custom_call.1} parent=1 // loop_exit
      _
    %214 = vsyncpa [#allocation3], 1
    %s215 = scalar_lea.sflag [#allocation3], 1
    %216 = vsyncpa %s215, 1
    %217 = vsyncpa [#allocation6], 1
    %s218 = scalar_lea.sflag [#allocation6], 1
    %219 = vsyncpa %s218, 1
    %220 = vsyncpa [#allocation4], 1
    %s221 = scalar_lea.sflag [#allocation4], 1
    %222 = vsyncpa %s221, 1

// kernel: visual_transformer_forward.7
$region0: #{visual_transformer_forward.7}
  #allocation0 [shape = 'u32[]', space=smem, size = 0x4, offset = 0x4, fixed_abs, tag = 'smem constant byte address 0x4 - core index']
  #allocation1 [shape = 'u32[72,128]{1,0:T(1,128)}', space=vmem, size = 0x9000, scoped, tag = 'internal scratch']
  %s0 = inlined_call_operand.vmem [shape: bf16[2,5,32], index: 0, kind: input, shape index: {}]
  %s1 = inlined_call_operand.vmem [shape: f32[1,32], index: 1, kind: input, shape index: {}]
  %s2 = inlined_call_operand.vmem [shape: f32[1,32], index: 2, kind: input, shape index: {}]
  %s3 = inlined_call_operand.vmem [shape: f32[2,5,32], index: 3, kind: output, shape index: {}]
  %s4 = sld [smem:[#allocation0]]
  $region45: #{visual_transformer_forward.7} parent=0
    _
  %s6 = ssub.s32 1, %s4
  %s7 = scalar_select 0, %s6, %s4
  loop: start=0, step=1, limit=4
  $region2: #{visual_transformer_forward.7} parent=0 // loop_pre_header
    _
  $region3: #{visual_transformer_forward.7} parent=0 // loop_header
    %s9 = sphi 0, %s13
    %p10 = scmp.ge.s32.totalorder %s9, 4
    %s19 = sphi 0, %s21
    %s22 = sphi 0, %s19
    %s23 = sphi 0, %s22
    %s39 = sphi 0, %s23
    %s43 = sphi 0, %s43
    %s45 = sphi 0, %s43
    %s46 = sphi 0, %s45
    %s60 = sphi 0, %s46
    %s64 = sphi 0, %s64
    %s66 = sphi 0, %s64
    %s67 = sphi 0, %s66
    %s81 = sphi 0, %s67
    %s87 = sphi 0, %s89
    %s90 = sphi 0, %s87
    %s91 = sphi 0, %s90
    %s107 = sphi 0, %s91
  $region4: #{visual_transformer_forward.7} parent=0 // loop_header_branch
    %12 = sbr.rel (%p10) target = $region8
  $region5: #{visual_transformer_forward.7} parent=0 // loop_body
    %s14 = ssub.s32 %s9, 1
    %s15 = ssub.s32 %s9, 2
    %s16 = sadd.s32 %s9, 1
    %s17 = ssub.s32 %s9, %s16
    %p18 = scmp.eq.s32.totalorder %s17, 0
    %s20 = sadd.s32 %s19, 1
    %s21 = scalar_select %p18, %s19, %s20
    %p24 = pneg %p18
    %p25 = scmp.eq.s32.totalorder %s9, 1
    %p26 = por %p24, %p25
    %p27 = scmp.ne.s32.totalorder %s19, %s22
    %p28 = scmp.eq.s32.totalorder %s9, 0
    %p29 = por %p27, %p28
    %p30 = scmp.ne.s32.totalorder %s19, %s22
    %p31 = scmp.eq.s32.totalorder %s14, 1
    %p32 = por %p30, %p31
    %p33 = scmp.ne.s32.totalorder %s22, %s23
    %p34 = scmp.eq.s32.totalorder %s14, 0
    %p35 = por %p33, %p34
    %p36 = scmp.ne.s32.totalorder %s22, %s23
    %p37 = scmp.eq.s32.totalorder %s15, 1
    %p38 = por %p36, %p37
    %p40 = scmp.ne.s32.totalorder %s23, %s39
    %p41 = scmp.eq.s32.totalorder %s15, 0
    %p42 = por %p40, %p41
    %s44 = sadd.s32 %s43, 1
    %p47 = scmp.eq.s32.totalorder %s9, 1
    %p48 = scmp.ne.s32.totalorder %s43, %s45
    %p49 = scmp.eq.s32.totalorder %s9, 0
    %p50 = por %p48, %p49
    %p51 = scmp.ne.s32.totalorder %s43, %s45
    %p52 = scmp.eq.s32.totalorder %s14, 1
    %p53 = por %p51, %p52
    %p54 = scmp.ne.s32.totalorder %s45, %s46
    %p55 = scmp.eq.s32.totalorder %s14, 0
    %p56 = por %p54, %p55
    %p57 = scmp.ne.s32.totalorder %s45, %s46
    %p58 = scmp.eq.s32.totalorder %s15, 1
    %p59 = por %p57, %p58
    %p61 = scmp.ne.s32.totalorder %s46, %s60
    %p62 = scmp.eq.s32.totalorder %s15, 0
    %p63 = por %p61, %p62
    %s65 = sadd.s32 %s64, 1
    %p68 = scmp.eq.s32.totalorder %s9, 1
    %p69 = scmp.ne.s32.totalorder %s64, %s66
    %p70 = scmp.eq.s32.totalorder %s9, 0
    %p71 = por %p69, %p70
    %p72 = scmp.ne.s32.totalorder %s64, %s66
    %p73 = scmp.eq.s32.totalorder %s14, 1
    %p74 = por %p72, %p73
    %p75 = scmp.ne.s32.totalorder %s66, %s67
    %p76 = scmp.eq.s32.totalorder %s14, 0
    %p77 = por %p75, %p76
    %p78 = scmp.ne.s32.totalorder %s66, %s67
    %p79 = scmp.eq.s32.totalorder %s15, 1
    %p80 = por %p78, %p79
    %p82 = scmp.ne.s32.totalorder %s67, %s81
    %p83 = scmp.eq.s32.totalorder %s15, 0
    %p84 = por %p82, %p83
    %s85 = ssub.s32 %s9, %s16
    %p86 = scmp.eq.s32.totalorder %s85, 0
    %s88 = sadd.s32 %s87, 1
    %s89 = scalar_select %p86, %s87, %s88
    %p92 = pneg %p86
    %p93 = scmp.eq.s32.totalorder %s9, 1
    %p94 = por %p92, %p93
    %p95 = scmp.ne.s32.totalorder %s87, %s90
    %p96 = scmp.eq.s32.totalorder %s9, 0
    %p97 = por %p95, %p96
    %p98 = scmp.ne.s32.totalorder %s87, %s90
    %p99 = scmp.eq.s32.totalorder %s14, 1
    %p100 = por %p98, %p99
    %p101 = scmp.ne.s32.totalorder %s90, %s91
    %p102 = scmp.eq.s32.totalorder %s14, 0
    %p103 = por %p101, %p102
    %p104 = scmp.ne.s32.totalorder %s90, %s91
    %p105 = scmp.eq.s32.totalorder %s15, 1
    %p106 = por %p104, %p105
    %p108 = scmp.ne.s32.totalorder %s91, %s107
    %p109 = scmp.eq.s32.totalorder %s15, 0
    %p110 = por %p108, %p109
    %p111 = scmp.le.s32.totalorder 1, %s9
    %p112 = scmp.lt.s32.totalorder %s9, 3
    %p113 = pnand %p111, %p112
    %p114 = pneg %p113
    // Predicated region
    $region9: #{visual_transformer_forward.7} parent=5 // pred_check
      _
    $region10: #{visual_transformer_forward.7} parent=5 // pred_check_branch
      %116 = sbr.rel (%p113) target = $region12
    $region11: #{visual_transformer_forward.7} parent=5 // pred_region
      %s117 = ssub.s32 %s9, 1
      // Predicated region
      $region13: #{visual_transformer_forward.7} parent=11 // pred_check
        %p118 = pneg %p56
      $region14: #{visual_transformer_forward.7} parent=11 // pred_check_branch
        %120 = sbr.rel (%p118) target = $region16
      $region15: #{visual_transformer_forward.7} parent=11 // pred_region
        _
      $region16: #{visual_transformer_forward.7} parent=11 // pred_fallthru
        _
      // Predicated region
      $region17: #{visual_transformer_forward.7} parent=11 // pred_check
        %p121 = pneg %p77
      $region18: #{visual_transformer_forward.7} parent=11 // pred_check_branch
        %123 = sbr.rel (%p121) target = $region20
      $region19: #{visual_transformer_forward.7} parent=11 // pred_region
        _
      $region20: #{visual_transformer_forward.7} parent=11 // pred_fallthru
        _
    $region12: #{visual_transformer_forward.7} parent=5 // pred_fallthru
      _
    %p124 = scmp.lt.s32.totalorder %s9, 2
    // Predicated region
    $region21: #{visual_transformer_forward.7} parent=5 // pred_check
      %p125 = pneg %p124
    $region22: #{visual_transformer_forward.7} parent=5 // pred_check_branch
      %127 = sbr.rel (%p125) target = $region24
    $region23: #{visual_transformer_forward.7} parent=5 // pred_region
      // Predicated region
      $region25: #{visual_transformer_forward.7} parent=23 // pred_check
        %p128 = pneg %p29
      $region26: #{visual_transformer_forward.7} parent=23 // pred_check_branch
        %130 = sbr.rel (%p128) target = $region28
      $region27: #{visual_transformer_forward.7} parent=23 // pred_region
        %p131 = scmp.lt.s32.totalorder %s9, 1
        %s132 = scalar_select %p131, %s9, 1
        %s133 = smul.addr %s132, 4
        %s134 = scalar_lea.vmem %s0, %s133
      $region28: #{visual_transformer_forward.7} parent=23 // pred_fallthru
        _
    $region24: #{visual_transformer_forward.7} parent=5 // pred_fallthru
      _
    %p135 = scmp.le.s32.totalorder 1, %s9
    %p136 = scmp.lt.s32.totalorder %s9, 3
    %p137 = pnand %p135, %p136
    %p138 = pneg %p137
    // Predicated region
    $region29: #{visual_transformer_forward.7} parent=5 // pred_check
      _
    $region30: #{visual_transformer_forward.7} parent=5 // pred_check_branch
      %140 = sbr.rel (%p137) target = $region32
    $region31: #{visual_transformer_forward.7} parent=5 // pred_region
      %s141 = ssub.s32 %s9, 1
      %p142 = scmp.lt.s32.totalorder %s14, 1
      %s143 = scalar_select %p142, %s14, 1
      %s144 = smul.addr %s143, 4
      %s145 = scalar_lea.vmem %s0, %s144
      %p146 = pneg %p35
      %p147 = pneg %p32
      %p148 = pneg %p56
      %p149 = pneg %p53
      %p150 = pneg %p77
      %p151 = pneg %p74
      %p152 = pneg %p103
      %p153 = pneg %p100
      %p154 = scmp.lt.s32.totalorder %s14, 1
      %s155 = scalar_select %p154, %s14, 1
      %s156 = smul.addr %s155, 8
      %s157 = scalar_lea.vmem %s3, %s156
      %p158 = scmp.lt.s32.totalorder %s14, 1
      %s159 = scalar_select %p158, %s14, 1
      %s160 = smul.addr %s159, 4
      %s161 = scalar_lea.vmem %s0, %s160
      %p162 = scmp.lt.s32.totalorder %s14, 1
      %s163 = scalar_select %p162, %s14, 1
      %s164 = smul.addr %s163, 8
      %s165 = scalar_lea.vmem %s3, %s164
      %v166 = vld [vmem:[%s161] sm:$0x7]
      %v167 = vld [vmem:[%s1] sm:$0x1]
      %v168 = vld [vmem:[%s2] sm:$0x1]
      %v169 = vunpack.c.l.bf16 %v166
      %vm170 = vcmask 258048
      %v171 = vsel %vm170, %v169, 0.0
      %172 = vadd.xlane.f32.xlu0 %v171
      %v173 = vpop.xlane.xlu0 %172
      %v174 = vrcp.pop 32.0
      %v175 = vmul.f32 32.0, %v174
      %v176 = vsub.f32 1.0, %v175
      %v177 = vmul.f32 %v174, %v176
      %v178 = vadd.f32 %v174, %v177
      %vm179 = vweird.f32 %v174
      %v180 = vsel %vm179, %v174, %v178
      %v181 = vmul.f32 %v173, %v180
      %v182 = vsub.f32 %v169, %v181
      %v183 = vmul.f32 %v182, %v182
      %v184 = vsel %vm170, %v183, 0.0
      %185 = vadd.xlane.f32.xlu0 %v184
      %v186 = vpop.xlane.xlu0 %185
      %v187 = vmul.f32 %v186, %v180
      %v188 = vadd.f32 %v187, 1e-05
      %v189 = vrsqrt.pop %v188
      %v190 = vmul.f32 %v189, %v188
      %v191 = vmul.f32 %v190, %v189
      %v192 = vmul.f32 0.5, %v191
      %v193 = vsub.f32 1.5, %v192
      %v194 = vmul.f32 %v189, %v193
      %vm195 = vweird.f32 %v188
      %vm196 = vweird.f32 %v189
      %vm197 = vmor %vm195, %vm196
      %v198 = vsel %vm197, %v189, %v194
      %v199 = vmul.f32 %v182, %v198
      %v201 = vperm.slane %v167, 0
      %v203 = vmul.f32 %v199, %v201
      %v205 = vperm.slane %v168, 0
      %v207 = vadd.f32 %v203, %v205
      %208 = vst.msk [vmem:[%s165] sm:$0x1f] %vm170, %v207
      %p209 = scmp.lt.s32.totalorder %s14, 1
      %s210 = scalar_select %p209, %s14, 1
      %s211 = smul.addr %s210, 8
      %s212 = scalar_lea.vmem %s3, %s211
      // Predicated region
      $region33: #{visual_transformer_forward.7} parent=31 // pred_check
        %p213 = pneg %p100
      $region34: #{visual_transformer_forward.7} parent=31 // pred_check_branch
        %215 = sbr.rel (%p213) target = $region36
      $region35: #{visual_transformer_forward.7} parent=31 // pred_region
        _
      $region36: #{visual_transformer_forward.7} parent=31 // pred_fallthru
        _
    $region32: #{visual_transformer_forward.7} parent=5 // pred_fallthru
      _
    %p216 = scmp.le.s32.totalorder 2, %s9
    // Predicated region
    $region37: #{visual_transformer_forward.7} parent=5 // pred_check
      %p217 = pneg %p216
    $region38: #{visual_transformer_forward.7} parent=5 // pred_check_branch
      %219 = sbr.rel (%p217) target = $region40
    $region39: #{visual_transformer_forward.7} parent=5 // pred_region
      %s220 = ssub.s32 %s9, 2
      // Predicated region
      $region41: #{visual_transformer_forward.7} parent=39 // pred_check
        %p221 = pneg %p106
      $region42: #{visual_transformer_forward.7} parent=39 // pred_check_branch
        %223 = sbr.rel (%p221) target = $region44
      $region43: #{visual_transformer_forward.7} parent=39 // pred_region
        %p224 = scmp.lt.s32.totalorder %s15, 1
        %s225 = scalar_select %p224, %s15, 1
        %s226 = smul.addr %s225, 8
        %s227 = scalar_lea.vmem %s3, %s226
      $region44: #{visual_transformer_forward.7} parent=39 // pred_fallthru
        _
    $region40: #{visual_transformer_forward.7} parent=5 // pred_fallthru
      _
  $region6: #{visual_transformer_forward.7} parent=0 // loop_footer
    %s13 = sadd.s32 1, %s9
  $region7: #{visual_transformer_forward.7} parent=0 // loop_footer_branch
    %8 = sbr.rel target = $region3
  $region8: #{visual_transformer_forward.7} parent=0 // loop_exit
    _

// kernel: visual_transformer_forward.4
$region0: #{visual_transformer_forward.4}
  #allocation0 [shape = 'u32[]', space=smem, size = 0x4, offset = 0x4, fixed_abs, tag = 'smem constant byte address 0x4 - core index']
  #allocation1 [shape = 'u32[72,128]{1,0:T(1,128)}', space=vmem, size = 0x9000, scoped, tag = 'internal scratch']
  %s0 = inlined_call_operand.vmem [shape: bf16[2,4,192], index: 0, kind: input, shape index: {}]
  %s1 = inlined_call_operand.vmem [shape: bf16[192,32], index: 1, kind: input, shape index: {}]
  %s2 = inlined_call_operand.vmem [shape: f32[1,32], index: 2, kind: input, shape index: {}]
  %s3 = inlined_call_operand.vmem [shape: f32[5,32], index: 3, kind: input, shape index: {}]
  %s4 = inlined_call_operand.vmem [shape: f32[1,32], index: 4, kind: input, shape index: {}]
  %s5 = inlined_call_operand.vmem [shape: f32[1,32], index: 5, kind: input, shape index: {}]
  %s6 = inlined_call_operand.vmem [shape: bf16[2,5,32], index: 6, kind: output, shape index: {}]
  %s7 = sld [smem:[#allocation0]]
  $region57: #{visual_transformer_forward.4} parent=0
    _
  %s9 = ssub.s32 1, %s7
  %s10 = scalar_select 0, %s9, %s7
  loop: start=0, step=1, limit=4
  $region2: #{visual_transformer_forward.4} parent=0 // loop_pre_header
    _
  $region3: #{visual_transformer_forward.4} parent=0 // loop_header
    %s12 = sphi 0, %s16
    %p13 = scmp.ge.s32.totalorder %s12, 4
    %s22 = sphi 0, %s24
    %s25 = sphi 0, %s22
    %s26 = sphi 0, %s25
    %s42 = sphi 0, %s26
    %s46 = sphi 0, %s46
    %s48 = sphi 0, %s46
    %s49 = sphi 0, %s48
    %s63 = sphi 0, %s49
    %s67 = sphi 0, %s67
    %s69 = sphi 0, %s67
    %s70 = sphi 0, %s69
    %s84 = sphi 0, %s70
    %s88 = sphi 0, %s88
    %s90 = sphi 0, %s88
    %s91 = sphi 0, %s90
    %s105 = sphi 0, %s91
    %s109 = sphi 0, %s109
    %s111 = sphi 0, %s109
    %s112 = sphi 0, %s111
    %s126 = sphi 0, %s112
    %s130 = sphi 0, %s130
    %s132 = sphi 0, %s130
    %s133 = sphi 0, %s132
    %s147 = sphi 0, %s133
    %s153 = sphi 0, %s155
    %s156 = sphi 0, %s153
    %s157 = sphi 0, %s156
    %s173 = sphi 0, %s157
  $region4: #{visual_transformer_forward.4} parent=0 // loop_header_branch
    %15 = sbr.rel (%p13) target = $region8
  $region5: #{visual_transformer_forward.4} parent=0 // loop_body
    %s17 = ssub.s32 %s12, 1
    %s18 = ssub.s32 %s12, 2
    %s19 = sadd.s32 %s12, 1
    %s20 = ssub.s32 %s12, %s19
    %p21 = scmp.eq.s32.totalorder %s20, 0
    %s23 = sadd.s32 %s22, 1
    %s24 = scalar_select %p21, %s22, %s23
    %p27 = pneg %p21
    %p28 = scmp.eq.s32.totalorder %s12, 1
    %p29 = por %p27, %p28
    %p30 = scmp.ne.s32.totalorder %s22, %s25
    %p31 = scmp.eq.s32.totalorder %s12, 0
    %p32 = por %p30, %p31
    %p33 = scmp.ne.s32.totalorder %s22, %s25
    %p34 = scmp.eq.s32.totalorder %s17, 1
    %p35 = por %p33, %p34
    %p36 = scmp.ne.s32.totalorder %s25, %s26
    %p37 = scmp.eq.s32.totalorder %s17, 0
    %p38 = por %p36, %p37
    %p39 = scmp.ne.s32.totalorder %s25, %s26
    %p40 = scmp.eq.s32.totalorder %s18, 1
    %p41 = por %p39, %p40
    %p43 = scmp.ne.s32.totalorder %s26, %s42
    %p44 = scmp.eq.s32.totalorder %s18, 0
    %p45 = por %p43, %p44
    %s47 = sadd.s32 %s46, 1
    %p50 = scmp.eq.s32.totalorder %s12, 1
    %p51 = scmp.ne.s32.totalorder %s46, %s48
    %p52 = scmp.eq.s32.totalorder %s12, 0
    %p53 = por %p51, %p52
    %p54 = scmp.ne.s32.totalorder %s46, %s48
    %p55 = scmp.eq.s32.totalorder %s17, 1
    %p56 = por %p54, %p55
    %p57 = scmp.ne.s32.totalorder %s48, %s49
    %p58 = scmp.eq.s32.totalorder %s17, 0
    %p59 = por %p57, %p58
    %p60 = scmp.ne.s32.totalorder %s48, %s49
    %p61 = scmp.eq.s32.totalorder %s18, 1
    %p62 = por %p60, %p61
    %p64 = scmp.ne.s32.totalorder %s49, %s63
    %p65 = scmp.eq.s32.totalorder %s18, 0
    %p66 = por %p64, %p65
    %s68 = sadd.s32 %s67, 1
    %p71 = scmp.eq.s32.totalorder %s12, 1
    %p72 = scmp.ne.s32.totalorder %s67, %s69
    %p73 = scmp.eq.s32.totalorder %s12, 0
    %p74 = por %p72, %p73
    %p75 = scmp.ne.s32.totalorder %s67, %s69
    %p76 = scmp.eq.s32.totalorder %s17, 1
    %p77 = por %p75, %p76
    %p78 = scmp.ne.s32.totalorder %s69, %s70
    %p79 = scmp.eq.s32.totalorder %s17, 0
    %p80 = por %p78, %p79
    %p81 = scmp.ne.s32.totalorder %s69, %s70
    %p82 = scmp.eq.s32.totalorder %s18, 1
    %p83 = por %p81, %p82
    %p85 = scmp.ne.s32.totalorder %s70, %s84
    %p86 = scmp.eq.s32.totalorder %s18, 0
    %p87 = por %p85, %p86
    %s89 = sadd.s32 %s88, 1
    %p92 = scmp.eq.s32.totalorder %s12, 1
    %p93 = scmp.ne.s32.totalorder %s88, %s90
    %p94 = scmp.eq.s32.totalorder %s12, 0
    %p95 = por %p93, %p94
    %p96 = scmp.ne.s32.totalorder %s88, %s90
    %p97 = scmp.eq.s32.totalorder %s17, 1
    %p98 = por %p96, %p97
    %p99 = scmp.ne.s32.totalorder %s90, %s91
    %p100 = scmp.eq.s32.totalorder %s17, 0
    %p101 = por %p99, %p100
    %p102 = scmp.ne.s32.totalorder %s90, %s91
    %p103 = scmp.eq.s32.totalorder %s18, 1
    %p104 = por %p102, %p103
    %p106 = scmp.ne.s32.totalorder %s91, %s105
    %p107 = scmp.eq.s32.totalorder %s18, 0
    %p108 = por %p106, %p107
    %s110 = sadd.s32 %s109, 1
    %p113 = scmp.eq.s32.totalorder %s12, 1
    %p114 = scmp.ne.s32.totalorder %s109, %s111
    %p115 = scmp.eq.s32.totalorder %s12, 0
    %p116 = por %p114, %p115
    %p117 = scmp.ne.s32.totalorder %s109, %s111
    %p118 = scmp.eq.s32.totalorder %s17, 1
    %p119 = por %p117, %p118
    %p120 = scmp.ne.s32.totalorder %s111, %s112
    %p121 = scmp.eq.s32.totalorder %s17, 0
    %p122 = por %p120, %p121
    %p123 = scmp.ne.s32.totalorder %s111, %s112
    %p124 = scmp.eq.s32.totalorder %s18, 1
    %p125 = por %p123, %p124
    %p127 = scmp.ne.s32.totalorder %s112, %s126
    %p128 = scmp.eq.s32.totalorder %s18, 0
    %p129 = por %p127, %p128
    %s131 = sadd.s32 %s130, 1
    %p134 = scmp.eq.s32.totalorder %s12, 1
    %p135 = scmp.ne.s32.totalorder %s130, %s132
    %p136 = scmp.eq.s32.totalorder %s12, 0
    %p137 = por %p135, %p136
    %p138 = scmp.ne.s32.totalorder %s130, %s132
    %p139 = scmp.eq.s32.totalorder %s17, 1
    %p140 = por %p138, %p139
    %p141 = scmp.ne.s32.totalorder %s132, %s133
    %p142 = scmp.eq.s32.totalorder %s17, 0
    %p143 = por %p141, %p142
    %p144 = scmp.ne.s32.totalorder %s132, %s133
    %p145 = scmp.eq.s32.totalorder %s18, 1
    %p146 = por %p144, %p145
    %p148 = scmp.ne.s32.totalorder %s133, %s147
    %p149 = scmp.eq.s32.totalorder %s18, 0
    %p150 = por %p148, %p149
    %s151 = ssub.s32 %s12, %s19
    %p152 = scmp.eq.s32.totalorder %s151, 0
    %s154 = sadd.s32 %s153, 1
    %s155 = scalar_select %p152, %s153, %s154
    %p158 = pneg %p152
    %p159 = scmp.eq.s32.totalorder %s12, 1
    %p160 = por %p158, %p159
    %p161 = scmp.ne.s32.totalorder %s153, %s156
    %p162 = scmp.eq.s32.totalorder %s12, 0
    %p163 = por %p161, %p162
    %p164 = scmp.ne.s32.totalorder %s153, %s156
    %p165 = scmp.eq.s32.totalorder %s17, 1
    %p166 = por %p164, %p165
    %p167 = scmp.ne.s32.totalorder %s156, %s157
    %p168 = scmp.eq.s32.totalorder %s17, 0
    %p169 = por %p167, %p168
    %p170 = scmp.ne.s32.totalorder %s156, %s157
    %p171 = scmp.eq.s32.totalorder %s18, 1
    %p172 = por %p170, %p171
    %p174 = scmp.ne.s32.totalorder %s157, %s173
    %p175 = scmp.eq.s32.totalorder %s18, 0
    %p176 = por %p174, %p175
    %p177 = scmp.le.s32.totalorder 1, %s12
    %p178 = scmp.lt.s32.totalorder %s12, 3
    %p179 = pnand %p177, %p178
    %p180 = pneg %p179
    // Predicated region
    $region9: #{visual_transformer_forward.4} parent=5 // pred_check
      _
    $region10: #{visual_transformer_forward.4} parent=5 // pred_check_branch
      %182 = sbr.rel (%p179) target = $region12
    $region11: #{visual_transformer_forward.4} parent=5 // pred_region
      %s183 = ssub.s32 %s12, 1
      // Predicated region
      $region13: #{visual_transformer_forward.4} parent=11 // pred_check
        %p184 = pneg %p59
      $region14: #{visual_transformer_forward.4} parent=11 // pred_check_branch
        %186 = sbr.rel (%p184) target = $region16
      $region15: #{visual_transformer_forward.4} parent=11 // pred_region
        _
      $region16: #{visual_transformer_forward.4} parent=11 // pred_fallthru
        _
      // Predicated region
      $region17: #{visual_transformer_forward.4} parent=11 // pred_check
        %p187 = pneg %p80
      $region18: #{visual_transformer_forward.4} parent=11 // pred_check_branch
        %189 = sbr.rel (%p187) target = $region20
      $region19: #{visual_transformer_forward.4} parent=11 // pred_region
        _
      $region20: #{visual_transformer_forward.4} parent=11 // pred_fallthru
        _
      // Predicated region
      $region21: #{visual_transformer_forward.4} parent=11 // pred_check
        %p190 = pneg %p101
      $region22: #{visual_transformer_forward.4} parent=11 // pred_check_branch
        %192 = sbr.rel (%p190) target = $region24
      $region23: #{visual_transformer_forward.4} parent=11 // pred_region
        _
      $region24: #{visual_transformer_forward.4} parent=11 // pred_fallthru
        _
      // Predicated region
      $region25: #{visual_transformer_forward.4} parent=11 // pred_check
        %p193 = pneg %p122
      $region26: #{visual_transformer_forward.4} parent=11 // pred_check_branch
        %195 = sbr.rel (%p193) target = $region28
      $region27: #{visual_transformer_forward.4} parent=11 // pred_region
        _
      $region28: #{visual_transformer_forward.4} parent=11 // pred_fallthru
        _
      // Predicated region
      $region29: #{visual_transformer_forward.4} parent=11 // pred_check
        %p196 = pneg %p143
      $region30: #{visual_transformer_forward.4} parent=11 // pred_check_branch
        %198 = sbr.rel (%p196) target = $region32
      $region31: #{visual_transformer_forward.4} parent=11 // pred_region
        _
      $region32: #{visual_transformer_forward.4} parent=11 // pred_fallthru
        _
    $region12: #{visual_transformer_forward.4} parent=5 // pred_fallthru
      _
    %p199 = scmp.lt.s32.totalorder %s12, 2
    // Predicated region
    $region33: #{visual_transformer_forward.4} parent=5 // pred_check
      %p200 = pneg %p199
    $region34: #{visual_transformer_forward.4} parent=5 // pred_check_branch
      %202 = sbr.rel (%p200) target = $region36
    $region35: #{visual_transformer_forward.4} parent=5 // pred_region
      // Predicated region
      $region37: #{visual_transformer_forward.4} parent=35 // pred_check
        %p203 = pneg %p32
      $region38: #{visual_transformer_forward.4} parent=35 // pred_check_branch
        %205 = sbr.rel (%p203) target = $region40
      $region39: #{visual_transformer_forward.4} parent=35 // pred_region
        %p206 = scmp.lt.s32.totalorder %s12, 1
        %s207 = scalar_select %p206, %s12, 1
        %s208 = smul.addr %s207, 2
        %s209 = smul.addr %s208, 2
        %s210 = scalar_lea.vmem %s0, %s209
      $region40: #{visual_transformer_forward.4} parent=35 // pred_fallthru
        _
    $region36: #{visual_transformer_forward.4} parent=5 // pred_fallthru
      _
    %p211 = scmp.le.s32.totalorder 1, %s12
    %p212 = scmp.lt.s32.totalorder %s12, 3
    %p213 = pnand %p211, %p212
    %p214 = pneg %p213
    // Predicated region
    $region41: #{visual_transformer_forward.4} parent=5 // pred_check
      _
    $region42: #{visual_transformer_forward.4} parent=5 // pred_check_branch
      %216 = sbr.rel (%p213) target = $region44
    $region43: #{visual_transformer_forward.4} parent=5 // pred_region
      %s217 = ssub.s32 %s12, 1
      %p218 = scmp.lt.s32.totalorder %s17, 1
      %s219 = scalar_select %p218, %s17, 1
      %s220 = smul.addr %s219, 2
      %s221 = smul.addr %s220, 2
      %s222 = scalar_lea.vmem %s0, %s221
      %p223 = pneg %p38
      %p224 = pneg %p35
      %p225 = pneg %p59
      %p226 = pneg %p56
      %p227 = pneg %p80
      %p228 = pneg %p77
      %p229 = pneg %p101
      %p230 = pneg %p98
      %p231 = pneg %p122
      %p232 = pneg %p119
      %p233 = pneg %p143
      %p234 = pneg %p140
      %p235 = pneg %p169
      %p236 = pneg %p166
      %p237 = scmp.lt.s32.totalorder %s17, 1
      %s238 = scalar_select %p237, %s17, 1
      %s239 = smul.addr %s238, 4
      %s240 = scalar_lea.vmem %s6, %s239
      %p241 = scmp.lt.s32.totalorder %s17, 1
      %s242 = scalar_select %p241, %s17, 1
      %s243 = smul.addr %s242, 2
      %s244 = smul.addr %s243, 2
      %s245 = scalar_lea.vmem %s0, %s244
      %p246 = scmp.lt.s32.totalorder %s17, 1
      %s247 = scalar_select %p246, %s17, 1
      %s248 = smul.addr %s247, 4
      %s249 = scalar_lea.vmem %s6, %s248
      %v251 = vld [vmem:[%s245] sm:$0xf]
      %v252 = vld [vmem:[%s1] sm:$0xf]
      %v253 = vld [vmem:[%s1 + $0x4] sm:$0xf]
      %v254 = vld [vmem:[%s1 + $0x8] sm:$0xf]
      %v255 = vld [vmem:[%s1 + $0xc] sm:$0xf]
      %v256 = vld [vmem:[%s1 + $0x10] sm:$0xf]
      %v257 = vld [vmem:[%s1 + $0x14] sm:$0xf]
      %v258 = vld [vmem:[%s1 + $0x18] sm:$0xf]
      %v259 = vld [vmem:[%s1 + $0x1c] sm:$0xf]
      %v260 = vld [vmem:[%s1 + $0x20] sm:$0xf]
      %v261 = vld [vmem:[%s1 + $0x24] sm:$0xf]
      %v262 = vld [vmem:[%s1 + $0x28] sm:$0xf]
      %v263 = vld [vmem:[%s1 + $0x2c] sm:$0xf]
      %v264 = vld [vmem:[%s1 + $0x30] sm:$0xf]
      %v265 = vld [vmem:[%s1 + $0x34] sm:$0xf]
      %v266 = vld [vmem:[%s1 + $0x38] sm:$0xf]
      %v267 = vld [vmem:[%s1 + $0x3c] sm:$0xf]
      %v268 = vld [vmem:[%s1 + $0x40] sm:$0xf]
      %v269 = vld [vmem:[%s1 + $0x44] sm:$0xf]
      %v270 = vld [vmem:[%s1 + $0x48] sm:$0xf]
      %v271 = vld [vmem:[%s1 + $0x4c] sm:$0xf]
      %v272 = vld [vmem:[%s1 + $0x50] sm:$0xf]
      %v273 = vld [vmem:[%s1 + $0x54] sm:$0xf]
      %v274 = vld [vmem:[%s1 + $0x58] sm:$0xf]
      %v275 = vld [vmem:[%s1 + $0x5c] sm:$0xf]
      %v276 = vld [vmem:[%s3] sm:$0x1f]
      %v277 = vld [vmem:[%s4] sm:$0x1]
      %v278 = vld [vmem:[%s5] sm:$0x1]
      %v279 = vld [vmem:[%s2] sm:$0x1]
      %v280 = vadd.f32 %v279, %v276
      %vm281 = vcmask 253952
      %v282 = vsel %vm281, %v280, 0.0
      %283 = vadd.xlane.f32.xlu0 %v282
      %v284 = vpop.xlane.xlu0 %283
      %v285 = vrcp.pop 32.0
      %v286 = vmul.f32 32.0, %v285
      %v287 = vsub.f32 1.0, %v286
      %v288 = vmul.f32 %v285, %v287
      %v289 = vadd.f32 %v285, %v288
      %vm290 = vweird.f32 %v285
      %v291 = vsel %vm290, %v285, %v289
      %v292 = vmul.f32 %v284, %v291
      %v293 = vsub.f32 %v280, %v292
      %v294 = vmul.f32 %v293, %v293
      %v295 = vsel %vm281, %v294, 0.0
      %296 = vadd.xlane.f32.xlu0 %v295
      %v297 = vpop.xlane.xlu0 %296
      %v298 = vmul.f32 %v297, %v291
      %v299 = vadd.f32 %v298, 1e-05
      %v300 = vrsqrt.pop %v299
      %v301 = vmul.f32 %v300, %v299
      %v302 = vmul.f32 %v301, %v300
      %v303 = vmul.f32 0.5, %v302
      %v304 = vsub.f32 1.5, %v303
      %v305 = vmul.f32 %v300, %v304
      %vm306 = vweird.f32 %v299
      %vm307 = vweird.f32 %v300
      %vm308 = vmor %vm306, %vm307
      %v309 = vsel %vm308, %v300, %v305
      %v310 = vmul.f32 %v293, %v309
      %v311 = vmul.f32 %v310, %v277
      %v312 = vadd.f32 %v311, %v278
      %v313 = vpack.c.bf16 %v312, %v312
      %vm314 = vcmask 253952
      %vm315 = vsmask.f32 256
      %vm316 = vmand %vm314, %vm315
      %v317 = vld [vmem:[%s249] sm:$0x1]
      %v318 = vsel %vm316, %v313, %v317
      %319 = vst [vmem:[%s249] sm:$0x1] %v318
      %321 = vst [vmem:[#allocation1] ss:$4 sm:$0xff] %v251
      %v322 = vld.sshfl [vmem:[#allocation1] sm:$0xff pattern:$0x73625140]
      %v323 = vld.sshfl [vmem:[#allocation1 + $0x8] sm:$0xff pattern:$0x73625140]
      %v349 = vunpack.c.l.b16 %v252
      %v350 = vunpack.c.l.b16 %v253
      %v351 = vunpack.c.l.b16 %v254
      %v352 = vunpack.c.l.b16 %v255
      %v353 = vunpack.c.l.b16 %v256
      %v354 = vunpack.c.l.b16 %v257
      %v355 = vunpack.c.l.b16 %v258
      %v356 = vunpack.c.l.b16 %v259
      %v357 = vunpack.c.l.b16 %v260
      %v358 = vunpack.c.l.b16 %v261
      %v359 = vunpack.c.l.b16 %v262
      %v360 = vunpack.c.l.b16 %v263
      %v361 = vunpack.c.l.b16 %v264
      %v362 = vunpack.c.l.b16 %v265
      %v363 = vunpack.c.l.b16 %v266
      %v364 = vunpack.c.l.b16 %v267
      %v365 = vunpack.c.l.b16 %v268
      %v366 = vunpack.c.l.b16 %v269
      %v367 = vunpack.c.l.b16 %v270
      %v368 = vunpack.c.l.b16 %v271
      %v369 = vunpack.c.l.b16 %v272
      %v370 = vunpack.c.l.b16 %v273
      %v371 = vunpack.c.l.b16 %v274
      %v372 = vunpack.c.l.b16 %v275
      %v373 = vpack.c.b16 %v350, %v349
      %v374 = vpack.c.b16 %v352, %v351
      %v375 = vpack.c.b16 %v354, %v353
      %v376 = vpack.c.b16 %v356, %v355
      %v377 = vpack.c.b16 %v358, %v357
      %v378 = vpack.c.b16 %v360, %v359
      %v379 = vpack.c.b16 %v362, %v361
      %v380 = vpack.c.b16 %v364, %v363
      %v381 = vpack.c.b16 %v366, %v365
      %v382 = vpack.c.b16 %v368, %v367
      %v383 = vpack.c.b16 %v370, %v369
      %v384 = vpack.c.b16 %v372, %v371
      %v398 = vrot.slane %v276, 1
      %vm400 = vcmask 523264
      %v401 = vsel %vm400, %v323, 0
      %403 = vmatpush.bf16.msra.mxu0 %v380
      %404 = vmatpush.bf16.msra.mxu0 %v379
      %405 = vmatpush.bf16.msra.mxu0 %v378
      %406 = vmatpush.bf16.msra.mxu0 %v377
      %407 = vmatpush.bf16.msra.mxu0 %v376
      %408 = vmatpush.bf16.msra.mxu0 %v375
      %409 = vmatpush.bf16.msra.mxu0 %v374
      %410 = vmatpush.bf16.msra.mxu0 %v373
      %411 = vmatmul.bf16.gmra.mxu0 %v322
      %v412 = vpop.f32.mrf.mxu0
      %v413 = vadd.f32 %v398, %v412
      %v414 = vpop.f32.mrf.mxu0
      %415 = vdwg.mxu0
      %416 = vmatpush.bf16.msra.mxu0 0
      %417 = vmatpush.bf16.msra.mxu0 0
      %418 = vmatpush.bf16.msra.mxu0 0
      %419 = vmatpush.bf16.msra.mxu0 0
      %420 = vmatpush.bf16.msra.mxu0 %v384
      %421 = vmatpush.bf16.msra.mxu0 %v383
      %422 = vmatpush.bf16.msra.mxu0 %v382
      %423 = vmatpush.bf16.msra.mxu0 %v381
      %424 = vmatmul.bf16.gmra.mxu0 %v401
      %v425 = vpop.f32.mrf.mxu0
      %v426 = vadd.f32 %v413, %v425
      %v427 = vpop.f32.mrf.mxu0
      %428 = vdwg.mxu0
      %vm429 = vcmask 257024
      %v430 = vsel %vm429, %v426, 0.0
      %431 = vadd.xlane.f32.xlu0 %v430
      %v432 = vpop.xlane.xlu0 %431
      %v433 = vmul.f32 %v432, %v291
      %v434 = vsub.f32 %v426, %v433
      %v435 = vmul.f32 %v434, %v434
      %v436 = vsel %vm429, %v435, 0.0
      %437 = vadd.xlane.f32.xlu0 %v436
      %v438 = vpop.xlane.xlu0 %437
      %v439 = vmul.f32 %v438, %v291
      %v440 = vadd.f32 %v439, 1e-05
      %v441 = vrsqrt.pop %v440
      %v442 = vmul.f32 %v441, %v440
      %v443 = vmul.f32 %v442, %v441
      %v444 = vmul.f32 0.5, %v443
      %v445 = vsub.f32 1.5, %v444
      %v446 = vmul.f32 %v441, %v445
      %vm447 = vweird.f32 %v440
      %vm448 = vweird.f32 %v441
      %vm449 = vmor %vm447, %vm448
      %v450 = vsel %vm449, %v441, %v446
      %v451 = vmul.f32 %v434, %v450
      %v453 = vperm.slane %v277, 0
      %v455 = vmul.f32 %v451, %v453
      %v457 = vperm.slane %v278, 0
      %v459 = vadd.f32 %v455, %v457
      %v460 = vpack.c.bf16 %v459, %v459
      %v462 = vshrl.u32 %v460, 16
      %v464 = vrot.slane %v462, 7
      %v465 = vshll.u32 %v460, 16
      %v467 = vor.u32 %v464, %v465
      %vm469 = vcmask 256000
      %vm470 = vsmask.f32 2306
      %vm471 = vmand %vm469, %vm470
      %v472 = vld [vmem:[%s249] sm:$0x7]
      %v473 = vsel %vm471, %v467, %v472
      %474 = vst [vmem:[%s249] sm:$0x7] %v473
      %p475 = scmp.lt.s32.totalorder %s17, 1
      %s476 = scalar_select %p475, %s17, 1
      %s477 = smul.addr %s476, 4
      %s478 = scalar_lea.vmem %s6, %s477
      // Predicated region
      $region45: #{visual_transformer_forward.4} parent=43 // pred_check
        %p479 = pneg %p166
      $region46: #{visual_transformer_forward.4} parent=43 // pred_check_branch
        %481 = sbr.rel (%p479) target = $region48
      $region47: #{visual_transformer_forward.4} parent=43 // pred_region
        _
      $region48: #{visual_transformer_forward.4} parent=43 // pred_fallthru
        _
    $region44: #{visual_transformer_forward.4} parent=5 // pred_fallthru
      _
    %p482 = scmp.le.s32.totalorder 2, %s12
    // Predicated region
    $region49: #{visual_transformer_forward.4} parent=5 // pred_check
      %p483 = pneg %p482
    $region50: #{visual_transformer_forward.4} parent=5 // pred_check_branch
      %485 = sbr.rel (%p483) target = $region52
    $region51: #{visual_transformer_forward.4} parent=5 // pred_region
      %s486 = ssub.s32 %s12, 2
      // Predicated region
      $region53: #{visual_transformer_forward.4} parent=51 // pred_check
        %p487 = pneg %p172
      $region54: #{visual_transformer_forward.4} parent=51 // pred_check_branch
        %489 = sbr.rel (%p487) target = $region56
      $region55: #{visual_transformer_forward.4} parent=51 // pred_region
        %p490 = scmp.lt.s32.totalorder %s18, 1
        %s491 = scalar_select %p490, %s18, 1
        %s492 = smul.addr %s491, 4
        %s493 = scalar_lea.vmem %s6, %s492
      $region56: #{visual_transformer_forward.4} parent=51 // pred_fallthru
        _
    $region52: #{visual_transformer_forward.4} parent=5 // pred_fallthru
      _
  $region6: #{visual_transformer_forward.4} parent=0 // loop_footer
    %s16 = sadd.s32 1, %s12
  $region7: #{visual_transformer_forward.4} parent=0 // loop_footer_branch
    %11 = sbr.rel target = $region3
  $region8: #{visual_transformer_forward.4} parent=0 // loop_exit
    _

// kernel: visual_transformer_forward.5
$region0: #{visual_transformer_forward.5}
  #allocation0 [shape = 'u32[]', space=smem, size = 0x4, offset = 0x4, fixed_abs, tag = 'smem constant byte address 0x4 - core index']
  #allocation1 [shape = 'u32[72,128]{1,0:T(1,128)}', space=vmem, size = 0x9000, scoped, tag = 'internal scratch']
  #allocation2 [shape = 'bf16[4,5,8]{2,1,0:T(8,128)(2,1)}', space=vmem, size = 0x2000, scoped, tag = 'scratch operand']
  #allocation3 [shape = 'bf16[4,5,8]{2,1,0:T(8,128)(2,1)}', space=vmem, size = 0x2000, scoped, tag = 'scratch operand']
  #allocation4 [shape = 'bf16[4,5,8]{2,1,0:T(8,128)(2,1)}', space=vmem, size = 0x2000, scoped, tag = 'scratch operand']
  #allocation5 [shape = 'bf16[1,5,32]{2,1,0:T(8,128)(2,1)}', space=vmem, size = 0x800, scoped, tag = 'scratch operand']
  %s0 = inlined_call_operand.vmem [shape: bf16[2,5,32], index: 0, kind: input, shape index: {}]
  %s1 = inlined_call_operand.vmem [shape: f32[1,32], index: 1, kind: input, shape index: {}]
  %s2 = inlined_call_operand.vmem [shape: f32[1,32], index: 2, kind: input, shape index: {}]
  %s3 = inlined_call_operand.vmem [shape: bf16[32,96], index: 3, kind: input, shape index: {}]
  %s4 = inlined_call_operand.vmem [shape: f32[1,96], index: 4, kind: input, shape index: {}]
  %s5 = inlined_call_operand.vmem [shape: bf16[1,32,32], index: 5, kind: input, shape index: {}]
  %s6 = inlined_call_operand.vmem [shape: f32[1,32], index: 6, kind: input, shape index: {}]
  %s7 = inlined_call_operand.vmem [shape: f32[1,32], index: 7, kind: input, shape index: {}]
  %s8 = inlined_call_operand.vmem [shape: f32[1,32], index: 8, kind: input, shape index: {}]
  %s9 = inlined_call_operand.vmem [shape: bf16[1,32,128], index: 9, kind: input, shape index: {}]
  %s10 = inlined_call_operand.vmem [shape: f32[1,1,128], index: 10, kind: input, shape index: {}]
  %s11 = inlined_call_operand.vmem [shape: bf16[1,128,32], index: 11, kind: input, shape index: {}]
  %s12 = inlined_call_operand.vmem [shape: f32[1,32], index: 12, kind: input, shape index: {}]
  %s13 = inlined_call_operand.vmem [shape: bf16[2,5,32], index: 13, kind: output, shape index: {}]
  %s14 = sld [smem:[#allocation0]]
  $region85: #{visual_transformer_forward.5} parent=0
    _
  %s16 = ssub.s32 1, %s14
  %s17 = scalar_select 0, %s16, %s14
  loop: start=0, step=1, limit=4
  $region2: #{visual_transformer_forward.5} parent=0 // loop_pre_header
    _
  $region3: #{visual_transformer_forward.5} parent=0 // loop_header
    %s19 = sphi 0, %s23
    %p20 = scmp.ge.s32.totalorder %s19, 4
    %s29 = sphi 0, %s31
    %s32 = sphi 0, %s29
    %s33 = sphi 0, %s32
    %s49 = sphi 0, %s33
    %s53 = sphi 0, %s53
    %s55 = sphi 0, %s53
    %s56 = sphi 0, %s55
    %s70 = sphi 0, %s56
    %s74 = sphi 0, %s74
    %s76 = sphi 0, %s74
    %s77 = sphi 0, %s76
    %s91 = sphi 0, %s77
    %s95 = sphi 0, %s95
    %s97 = sphi 0, %s95
    %s98 = sphi 0, %s97
    %s112 = sphi 0, %s98
    %s116 = sphi 0, %s116
    %s118 = sphi 0, %s116
    %s119 = sphi 0, %s118
    %s133 = sphi 0, %s119
    %s137 = sphi 0, %s137
    %s139 = sphi 0, %s137
    %s140 = sphi 0, %s139
    %s154 = sphi 0, %s140
    %s158 = sphi 0, %s158
    %s160 = sphi 0, %s158
    %s161 = sphi 0, %s160
    %s175 = sphi 0, %s161
    %s179 = sphi 0, %s179
    %s181 = sphi 0, %s179
    %s182 = sphi 0, %s181
    %s196 = sphi 0, %s182
    %s200 = sphi 0, %s200
    %s202 = sphi 0, %s200
    %s203 = sphi 0, %s202
    %s217 = sphi 0, %s203
    %s221 = sphi 0, %s221
    %s223 = sphi 0, %s221
    %s224 = sphi 0, %s223
    %s238 = sphi 0, %s224
    %s242 = sphi 0, %s242
    %s244 = sphi 0, %s242
    %s245 = sphi 0, %s244
    %s259 = sphi 0, %s245
    %s263 = sphi 0, %s263
    %s265 = sphi 0, %s263
    %s266 = sphi 0, %s265
    %s280 = sphi 0, %s266
    %s284 = sphi 0, %s284
    %s286 = sphi 0, %s284
    %s287 = sphi 0, %s286
    %s301 = sphi 0, %s287
    %s307 = sphi 0, %s309
    %s310 = sphi 0, %s307
    %s311 = sphi 0, %s310
    %s327 = sphi 0, %s311
  $region4: #{visual_transformer_forward.5} parent=0 // loop_header_branch
    %22 = sbr.rel (%p20) target = $region8
  $region5: #{visual_transformer_forward.5} parent=0 // loop_body
    %s24 = ssub.s32 %s19, 1
    %s25 = ssub.s32 %s19, 2
    %s26 = sadd.s32 %s19, 1
    %s27 = ssub.s32 %s19, %s26
    %p28 = scmp.eq.s32.totalorder %s27, 0
    %s30 = sadd.s32 %s29, 1
    %s31 = scalar_select %p28, %s29, %s30
    %p34 = pneg %p28
    %p35 = scmp.eq.s32.totalorder %s19, 1
    %p36 = por %p34, %p35
    %p37 = scmp.ne.s32.totalorder %s29, %s32
    %p38 = scmp.eq.s32.totalorder %s19, 0
    %p39 = por %p37, %p38
    %p40 = scmp.ne.s32.totalorder %s29, %s32
    %p41 = scmp.eq.s32.totalorder %s24, 1
    %p42 = por %p40, %p41
    %p43 = scmp.ne.s32.totalorder %s32, %s33
    %p44 = scmp.eq.s32.totalorder %s24, 0
    %p45 = por %p43, %p44
    %p46 = scmp.ne.s32.totalorder %s32, %s33
    %p47 = scmp.eq.s32.totalorder %s25, 1
    %p48 = por %p46, %p47
    %p50 = scmp.ne.s32.totalorder %s33, %s49
    %p51 = scmp.eq.s32.totalorder %s25, 0
    %p52 = por %p50, %p51
    %s54 = sadd.s32 %s53, 1
    %p57 = scmp.eq.s32.totalorder %s19, 1
    %p58 = scmp.ne.s32.totalorder %s53, %s55
    %p59 = scmp.eq.s32.totalorder %s19, 0
    %p60 = por %p58, %p59
    %p61 = scmp.ne.s32.totalorder %s53, %s55
    %p62 = scmp.eq.s32.totalorder %s24, 1
    %p63 = por %p61, %p62
    %p64 = scmp.ne.s32.totalorder %s55, %s56
    %p65 = scmp.eq.s32.totalorder %s24, 0
    %p66 = por %p64, %p65
    %p67 = scmp.ne.s32.totalorder %s55, %s56
    %p68 = scmp.eq.s32.totalorder %s25, 1
    %p69 = por %p67, %p68
    %p71 = scmp.ne.s32.totalorder %s56, %s70
    %p72 = scmp.eq.s32.totalorder %s25, 0
    %p73 = por %p71, %p72
    %s75 = sadd.s32 %s74, 1
    %p78 = scmp.eq.s32.totalorder %s19, 1
    %p79 = scmp.ne.s32.totalorder %s74, %s76
    %p80 = scmp.eq.s32.totalorder %s19, 0
    %p81 = por %p79, %p80
    %p82 = scmp.ne.s32.totalorder %s74, %s76
    %p83 = scmp.eq.s32.totalorder %s24, 1
    %p84 = por %p82, %p83
    %p85 = scmp.ne.s32.totalorder %s76, %s77
    %p86 = scmp.eq.s32.totalorder %s24, 0
    %p87 = por %p85, %p86
    %p88 = scmp.ne.s32.totalorder %s76, %s77
    %p89 = scmp.eq.s32.totalorder %s25, 1
    %p90 = por %p88, %p89
    %p92 = scmp.ne.s32.totalorder %s77, %s91
    %p93 = scmp.eq.s32.totalorder %s25, 0
    %p94 = por %p92, %p93
    %s96 = sadd.s32 %s95, 1
    %p99 = scmp.eq.s32.totalorder %s19, 1
    %p100 = scmp.ne.s32.totalorder %s95, %s97
    %p101 = scmp.eq.s32.totalorder %s19, 0
    %p102 = por %p100, %p101
    %p103 = scmp.ne.s32.totalorder %s95, %s97
    %p104 = scmp.eq.s32.totalorder %s24, 1
    %p105 = por %p103, %p104
    %p106 = scmp.ne.s32.totalorder %s97, %s98
    %p107 = scmp.eq.s32.totalorder %s24, 0
    %p108 = por %p106, %p107
    %p109 = scmp.ne.s32.totalorder %s97, %s98
    %p110 = scmp.eq.s32.totalorder %s25, 1
    %p111 = por %p109, %p110
    %p113 = scmp.ne.s32.totalorder %s98, %s112
    %p114 = scmp.eq.s32.totalorder %s25, 0
    %p115 = por %p113, %p114
    %s117 = sadd.s32 %s116, 1
    %p120 = scmp.eq.s32.totalorder %s19, 1
    %p121 = scmp.ne.s32.totalorder %s116, %s118
    %p122 = scmp.eq.s32.totalorder %s19, 0
    %p123 = por %p121, %p122
    %p124 = scmp.ne.s32.totalorder %s116, %s118
    %p125 = scmp.eq.s32.totalorder %s24, 1
    %p126 = por %p124, %p125
    %p127 = scmp.ne.s32.totalorder %s118, %s119
    %p128 = scmp.eq.s32.totalorder %s24, 0
    %p129 = por %p127, %p128
    %p130 = scmp.ne.s32.totalorder %s118, %s119
    %p131 = scmp.eq.s32.totalorder %s25, 1
    %p132 = por %p130, %p131
    %p134 = scmp.ne.s32.totalorder %s119, %s133
    %p135 = scmp.eq.s32.totalorder %s25, 0
    %p136 = por %p134, %p135
    %s138 = sadd.s32 %s137, 1
    %p141 = scmp.eq.s32.totalorder %s19, 1
    %p142 = scmp.ne.s32.totalorder %s137, %s139
    %p143 = scmp.eq.s32.totalorder %s19, 0
    %p144 = por %p142, %p143
    %p145 = scmp.ne.s32.totalorder %s137, %s139
    %p146 = scmp.eq.s32.totalorder %s24, 1
    %p147 = por %p145, %p146
    %p148 = scmp.ne.s32.totalorder %s139, %s140
    %p149 = scmp.eq.s32.totalorder %s24, 0
    %p150 = por %p148, %p149
    %p151 = scmp.ne.s32.totalorder %s139, %s140
    %p152 = scmp.eq.s32.totalorder %s25, 1
    %p153 = por %p151, %p152
    %p155 = scmp.ne.s32.totalorder %s140, %s154
    %p156 = scmp.eq.s32.totalorder %s25, 0
    %p157 = por %p155, %p156
    %s159 = sadd.s32 %s158, 1
    %p162 = scmp.eq.s32.totalorder %s19, 1
    %p163 = scmp.ne.s32.totalorder %s158, %s160
    %p164 = scmp.eq.s32.totalorder %s19, 0
    %p165 = por %p163, %p164
    %p166 = scmp.ne.s32.totalorder %s158, %s160
    %p167 = scmp.eq.s32.totalorder %s24, 1
    %p168 = por %p166, %p167
    %p169 = scmp.ne.s32.totalorder %s160, %s161
    %p170 = scmp.eq.s32.totalorder %s24, 0
    %p171 = por %p169, %p170
    %p172 = scmp.ne.s32.totalorder %s160, %s161
    %p173 = scmp.eq.s32.totalorder %s25, 1
    %p174 = por %p172, %p173
    %p176 = scmp.ne.s32.totalorder %s161, %s175
    %p177 = scmp.eq.s32.totalorder %s25, 0
    %p178 = por %p176, %p177
    %s180 = sadd.s32 %s179, 1
    %p183 = scmp.eq.s32.totalorder %s19, 1
    %p184 = scmp.ne.s32.totalorder %s179, %s181
    %p185 = scmp.eq.s32.totalorder %s19, 0
    %p186 = por %p184, %p185
    %p187 = scmp.ne.s32.totalorder %s179, %s181
    %p188 = scmp.eq.s32.totalorder %s24, 1
    %p189 = por %p187, %p188
    %p190 = scmp.ne.s32.totalorder %s181, %s182
    %p191 = scmp.eq.s32.totalorder %s24, 0
    %p192 = por %p190, %p191
    %p193 = scmp.ne.s32.totalorder %s181, %s182
    %p194 = scmp.eq.s32.totalorder %s25, 1
    %p195 = por %p193, %p194
    %p197 = scmp.ne.s32.totalorder %s182, %s196
    %p198 = scmp.eq.s32.totalorder %s25, 0
    %p199 = por %p197, %p198
    %s201 = sadd.s32 %s200, 1
    %p204 = scmp.eq.s32.totalorder %s19, 1
    %p205 = scmp.ne.s32.totalorder %s200, %s202
    %p206 = scmp.eq.s32.totalorder %s19, 0
    %p207 = por %p205, %p206
    %p208 = scmp.ne.s32.totalorder %s200, %s202
    %p209 = scmp.eq.s32.totalorder %s24, 1
    %p210 = por %p208, %p209
    %p211 = scmp.ne.s32.totalorder %s202, %s203
    %p212 = scmp.eq.s32.totalorder %s24, 0
    %p213 = por %p211, %p212
    %p214 = scmp.ne.s32.totalorder %s202, %s203
    %p215 = scmp.eq.s32.totalorder %s25, 1
    %p216 = por %p214, %p215
    %p218 = scmp.ne.s32.totalorder %s203, %s217
    %p219 = scmp.eq.s32.totalorder %s25, 0
    %p220 = por %p218, %p219
    %s222 = sadd.s32 %s221, 1
    %p225 = scmp.eq.s32.totalorder %s19, 1
    %p226 = scmp.ne.s32.totalorder %s221, %s223
    %p227 = scmp.eq.s32.totalorder %s19, 0
    %p228 = por %p226, %p227
    %p229 = scmp.ne.s32.totalorder %s221, %s223
    %p230 = scmp.eq.s32.totalorder %s24, 1
    %p231 = por %p229, %p230
    %p232 = scmp.ne.s32.totalorder %s223, %s224
    %p233 = scmp.eq.s32.totalorder %s24, 0
    %p234 = por %p232, %p233
    %p235 = scmp.ne.s32.totalorder %s223, %s224
    %p236 = scmp.eq.s32.totalorder %s25, 1
    %p237 = por %p235, %p236
    %p239 = scmp.ne.s32.totalorder %s224, %s238
    %p240 = scmp.eq.s32.totalorder %s25, 0
    %p241 = por %p239, %p240
    %s243 = sadd.s32 %s242, 1
    %p246 = scmp.eq.s32.totalorder %s19, 1
    %p247 = scmp.ne.s32.totalorder %s242, %s244
    %p248 = scmp.eq.s32.totalorder %s19, 0
    %p249 = por %p247, %p248
    %p250 = scmp.ne.s32.totalorder %s242, %s244
    %p251 = scmp.eq.s32.totalorder %s24, 1
    %p252 = por %p250, %p251
    %p253 = scmp.ne.s32.totalorder %s244, %s245
    %p254 = scmp.eq.s32.totalorder %s24, 0
    %p255 = por %p253, %p254
    %p256 = scmp.ne.s32.totalorder %s244, %s245
    %p257 = scmp.eq.s32.totalorder %s25, 1
    %p258 = por %p256, %p257
    %p260 = scmp.ne.s32.totalorder %s245, %s259
    %p261 = scmp.eq.s32.totalorder %s25, 0
    %p262 = por %p260, %p261
    %s264 = sadd.s32 %s263, 1
    %p267 = scmp.eq.s32.totalorder %s19, 1
    %p268 = scmp.ne.s32.totalorder %s263, %s265
    %p269 = scmp.eq.s32.totalorder %s19, 0
    %p270 = por %p268, %p269
    %p271 = scmp.ne.s32.totalorder %s263, %s265
    %p272 = scmp.eq.s32.totalorder %s24, 1
    %p273 = por %p271, %p272
    %p274 = scmp.ne.s32.totalorder %s265, %s266
    %p275 = scmp.eq.s32.totalorder %s24, 0
    %p276 = por %p274, %p275
    %p277 = scmp.ne.s32.totalorder %s265, %s266
    %p278 = scmp.eq.s32.totalorder %s25, 1
    %p279 = por %p277, %p278
    %p281 = scmp.ne.s32.totalorder %s266, %s280
    %p282 = scmp.eq.s32.totalorder %s25, 0
    %p283 = por %p281, %p282
    %s285 = sadd.s32 %s284, 1
    %p288 = scmp.eq.s32.totalorder %s19, 1
    %p289 = scmp.ne.s32.totalorder %s284, %s286
    %p290 = scmp.eq.s32.totalorder %s19, 0
    %p291 = por %p289, %p290
    %p292 = scmp.ne.s32.totalorder %s284, %s286
    %p293 = scmp.eq.s32.totalorder %s24, 1
    %p294 = por %p292, %p293
    %p295 = scmp.ne.s32.totalorder %s286, %s287
    %p296 = scmp.eq.s32.totalorder %s24, 0
    %p297 = por %p295, %p296
    %p298 = scmp.ne.s32.totalorder %s286, %s287
    %p299 = scmp.eq.s32.totalorder %s25, 1
    %p300 = por %p298, %p299
    %p302 = scmp.ne.s32.totalorder %s287, %s301
    %p303 = scmp.eq.s32.totalorder %s25, 0
    %p304 = por %p302, %p303
    %s305 = ssub.s32 %s19, %s26
    %p306 = scmp.eq.s32.totalorder %s305, 0
    %s308 = sadd.s32 %s307, 1
    %s309 = scalar_select %p306, %s307, %s308
    %p312 = pneg %p306
    %p313 = scmp.eq.s32.totalorder %s19, 1
    %p314 = por %p312, %p313
    %p315 = scmp.ne.s32.totalorder %s307, %s310
    %p316 = scmp.eq.s32.totalorder %s19, 0
    %p317 = por %p315, %p316
    %p318 = scmp.ne.s32.totalorder %s307, %s310
    %p319 = scmp.eq.s32.totalorder %s24, 1
    %p320 = por %p318, %p319
    %p321 = scmp.ne.s32.totalorder %s310, %s311
    %p322 = scmp.eq.s32.totalorder %s24, 0
    %p323 = por %p321, %p322
    %p324 = scmp.ne.s32.totalorder %s310, %s311
    %p325 = scmp.eq.s32.totalorder %s25, 1
    %p326 = por %p324, %p325
    %p328 = scmp.ne.s32.totalorder %s311, %s327
    %p329 = scmp.eq.s32.totalorder %s25, 0
    %p330 = por %p328, %p329
    %p331 = scmp.le.s32.totalorder 1, %s19
    %p332 = scmp.lt.s32.totalorder %s19, 3
    %p333 = pnand %p331, %p332
    %p334 = pneg %p333
    // Predicated region
    $region9: #{visual_transformer_forward.5} parent=5 // pred_check
      _
    $region10: #{visual_transformer_forward.5} parent=5 // pred_check_branch
      %336 = sbr.rel (%p333) target = $region12
    $region11: #{visual_transformer_forward.5} parent=5 // pred_region
      %s337 = ssub.s32 %s19, 1
      // Predicated region
      $region13: #{visual_transformer_forward.5} parent=11 // pred_check
        %p338 = pneg %p66
      $region14: #{visual_transformer_forward.5} parent=11 // pred_check_branch
        %340 = sbr.rel (%p338) target = $region16
      $region15: #{visual_transformer_forward.5} parent=11 // pred_region
        _
      $region16: #{visual_transformer_forward.5} parent=11 // pred_fallthru
        _
      // Predicated region
      $region17: #{visual_transformer_forward.5} parent=11 // pred_check
        %p341 = pneg %p87
      $region18: #{visual_transformer_forward.5} parent=11 // pred_check_branch
        %343 = sbr.rel (%p341) target = $region20
      $region19: #{visual_transformer_forward.5} parent=11 // pred_region
        _
      $region20: #{visual_transformer_forward.5} parent=11 // pred_fallthru
        _
      // Predicated region
      $region21: #{visual_transformer_forward.5} parent=11 // pred_check
        %p344 = pneg %p108
      $region22: #{visual_transformer_forward.5} parent=11 // pred_check_branch
        %346 = sbr.rel (%p344) target = $region24
      $region23: #{visual_transformer_forward.5} parent=11 // pred_region
        _
      $region24: #{visual_transformer_forward.5} parent=11 // pred_fallthru
        _
      // Predicated region
      $region25: #{visual_transformer_forward.5} parent=11 // pred_check
        %p347 = pneg %p129
      $region26: #{visual_transformer_forward.5} parent=11 // pred_check_branch
        %349 = sbr.rel (%p347) target = $region28
      $region27: #{visual_transformer_forward.5} parent=11 // pred_region
        _
      $region28: #{visual_transformer_forward.5} parent=11 // pred_fallthru
        _
      // Predicated region
      $region29: #{visual_transformer_forward.5} parent=11 // pred_check
        %p350 = pneg %p150
      $region30: #{visual_transformer_forward.5} parent=11 // pred_check_branch
        %352 = sbr.rel (%p350) target = $region32
      $region31: #{visual_transformer_forward.5} parent=11 // pred_region
        _
      $region32: #{visual_transformer_forward.5} parent=11 // pred_fallthru
        _
      // Predicated region
      $region33: #{visual_transformer_forward.5} parent=11 // pred_check
        %p353 = pneg %p171
      $region34: #{visual_transformer_forward.5} parent=11 // pred_check_branch
        %355 = sbr.rel (%p353) target = $region36
      $region35: #{visual_transformer_forward.5} parent=11 // pred_region
        _
      $region36: #{visual_transformer_forward.5} parent=11 // pred_fallthru
        _
      // Predicated region
      $region37: #{visual_transformer_forward.5} parent=11 // pred_check
        %p356 = pneg %p192
      $region38: #{visual_transformer_forward.5} parent=11 // pred_check_branch
        %358 = sbr.rel (%p356) target = $region40
      $region39: #{visual_transformer_forward.5} parent=11 // pred_region
        _
      $region40: #{visual_transformer_forward.5} parent=11 // pred_fallthru
        _
      // Predicated region
      $region41: #{visual_transformer_forward.5} parent=11 // pred_check
        %p359 = pneg %p213
      $region42: #{visual_transformer_forward.5} parent=11 // pred_check_branch
        %361 = sbr.rel (%p359) target = $region44
      $region43: #{visual_transformer_forward.5} parent=11 // pred_region
        _
      $region44: #{visual_transformer_forward.5} parent=11 // pred_fallthru
        _
      // Predicated region
      $region45: #{visual_transformer_forward.5} parent=11 // pred_check
        %p362 = pneg %p234
      $region46: #{visual_transformer_forward.5} parent=11 // pred_check_branch
        %364 = sbr.rel (%p362) target = $region48
      $region47: #{visual_transformer_forward.5} parent=11 // pred_region
        _
      $region48: #{visual_transformer_forward.5} parent=11 // pred_fallthru
        _
      // Predicated region
      $region49: #{visual_transformer_forward.5} parent=11 // pred_check
        %p365 = pneg %p255
      $region50: #{visual_transformer_forward.5} parent=11 // pred_check_branch
        %367 = sbr.rel (%p365) target = $region52
      $region51: #{visual_transformer_forward.5} parent=11 // pred_region
        _
      $region52: #{visual_transformer_forward.5} parent=11 // pred_fallthru
        _
      // Predicated region
      $region53: #{visual_transformer_forward.5} parent=11 // pred_check
        %p368 = pneg %p276
      $region54: #{visual_transformer_forward.5} parent=11 // pred_check_branch
        %370 = sbr.rel (%p368) target = $region56
      $region55: #{visual_transformer_forward.5} parent=11 // pred_region
        _
      $region56: #{visual_transformer_forward.5} parent=11 // pred_fallthru
        _
      // Predicated region
      $region57: #{visual_transformer_forward.5} parent=11 // pred_check
        %p371 = pneg %p297
      $region58: #{visual_transformer_forward.5} parent=11 // pred_check_branch
        %373 = sbr.rel (%p371) target = $region60
      $region59: #{visual_transformer_forward.5} parent=11 // pred_region
        _
      $region60: #{visual_transformer_forward.5} parent=11 // pred_fallthru
        _
    $region12: #{visual_transformer_forward.5} parent=5 // pred_fallthru
      _
    %p374 = scmp.lt.s32.totalorder %s19, 2
    // Predicated region
    $region61: #{visual_transformer_forward.5} parent=5 // pred_check
      %p375 = pneg %p374
    $region62: #{visual_transformer_forward.5} parent=5 // pred_check_branch
      %377 = sbr.rel (%p375) target = $region64
    $region63: #{visual_transformer_forward.5} parent=5 // pred_region
      // Predicated region
      $region65: #{visual_transformer_forward.5} parent=63 // pred_check
        %p378 = pneg %p39
      $region66: #{visual_transformer_forward.5} parent=63 // pred_check_branch
        %380 = sbr.rel (%p378) target = $region68
      $region67: #{visual_transformer_forward.5} parent=63 // pred_region
        %p381 = scmp.lt.s32.totalorder %s19, 1
        %s382 = scalar_select %p381, %s19, 1
        %s383 = smul.addr %s382, 4
        %s384 = scalar_lea.vmem %s0, %s383
      $region68: #{visual_transformer_forward.5} parent=63 // pred_fallthru
        _
    $region64: #{visual_transformer_forward.5} parent=5 // pred_fallthru
      _
    %p385 = scmp.le.s32.totalorder 1, %s19
    %p386 = scmp.lt.s32.totalorder %s19, 3
    %p387 = pnand %p385, %p386
    %p388 = pneg %p387
    // Predicated region
    $region69: #{visual_transformer_forward.5} parent=5 // pred_check
      _
    $region70: #{visual_transformer_forward.5} parent=5 // pred_check_branch
      %390 = sbr.rel (%p387) target = $region72
    $region71: #{visual_transformer_forward.5} parent=5 // pred_region
      %s391 = ssub.s32 %s19, 1
      %p392 = scmp.lt.s32.totalorder %s24, 1
      %s393 = scalar_select %p392, %s24, 1
      %s394 = smul.addr %s393, 4
      %s395 = scalar_lea.vmem %s0, %s394
      %p396 = pneg %p45
      %p397 = pneg %p42
      %p398 = pneg %p66
      %p399 = pneg %p63
      %p400 = pneg %p87
      %p401 = pneg %p84
      %p402 = pneg %p108
      %p403 = pneg %p105
      %p404 = pneg %p129
      %p405 = pneg %p126
      %p406 = pneg %p150
      %p407 = pneg %p147
      %p408 = pneg %p171
      %p409 = pneg %p168
      %p410 = pneg %p192
      %p411 = pneg %p189
      %p412 = pneg %p213
      %p413 = pneg %p210
      %p414 = pneg %p234
      %p415 = pneg %p231
      %p416 = pneg %p255
      %p417 = pneg %p252
      %p418 = pneg %p276
      %p419 = pneg %p273
      %p420 = pneg %p297
      %p421 = pneg %p294
      %p422 = pneg %p323
      %p423 = pneg %p320
      %p424 = scmp.lt.s32.totalorder %s24, 1
      %s425 = scalar_select %p424, %s24, 1
      %s426 = smul.addr %s425, 4
      %s427 = scalar_lea.vmem %s13, %s426
      %p428 = scmp.lt.s32.totalorder %s24, 1
      %s429 = scalar_select %p428, %s24, 1
      %s430 = smul.addr %s429, 4
      %s431 = scalar_lea.vmem %s0, %s430
      %p432 = scmp.lt.s32.totalorder %s24, 1
      %s433 = scalar_select %p432, %s24, 1
      %s434 = smul.addr %s433, 4
      %s435 = scalar_lea.vmem %s13, %s434
      %v437 = vld [vmem:[%s431] sm:$0x7]
      %v438 = vunpack.c.l.bf16 %v437
      %v439 = vld [vmem:[%s1] sm:$0x1]
      %v440 = vld [vmem:[%s2] sm:$0x1]
      %vm441 = vcmask 258048
      %v442 = vsel %vm441, %v438, 0.0
      %443 = vadd.xlane.f32.xlu0 %v442
      %v444 = vpop.xlane.xlu0 %443
      %v445 = vrcp.pop 32.0
      %v446 = vmul.f32 32.0, %v445
      %v447 = vsub.f32 1.0, %v446
      %v448 = vmul.f32 %v445, %v447
      %v449 = vadd.f32 %v445, %v448
      %vm450 = vweird.f32 %v445
      %v451 = vsel %vm450, %v445, %v449
      %v452 = vmul.f32 %v444, %v451
      %v453 = vsub.f32 %v438, %v452
      %v454 = vmul.f32 %v453, %v453
      %v455 = vsel %vm441, %v454, 0.0
      %456 = vadd.xlane.f32.xlu0 %v455
      %v457 = vpop.xlane.xlu0 %456
      %v458 = vmul.f32 %v457, %v451
      %v459 = vadd.f32 %v458, 1e-05
      %v460 = vrsqrt.pop %v459
      %v461 = vmul.f32 %v460, %v459
      %v462 = vmul.f32 %v461, %v460
      %v463 = vmul.f32 0.5, %v462
      %v464 = vsub.f32 1.5, %v463
      %v465 = vmul.f32 %v460, %v464
      %vm466 = vweird.f32 %v459
      %vm467 = vweird.f32 %v460
      %vm468 = vmor %vm466, %vm467
      %v469 = vsel %vm468, %v460, %v465
      %v470 = vmul.f32 %v453, %v469
      %v472 = vperm.slane %v439, 0
      %v474 = vmul.f32 %v470, %v472
      %v476 = vperm.slane %v440, 0
      %v478 = vadd.f32 %v474, %v476
      %v479 = vpack.c.bf16 %v478, %v478
      %v480 = vld [vmem:[%s3] sm:$0xf]
      %v481 = vld [vmem:[%s3 + $0x4] sm:$0xf]
      %v482 = vld [vmem:[%s3 + $0x8] sm:$0xf]
      %v483 = vld [vmem:[%s3 + $0xc] sm:$0xf]
      %v484 = vld [vmem:[%s4] sm:$0x1]
      %v486 = vperm.slane %v484, 0
      %v492 = vunpack.c.l.b16 %v480
      %v493 = vunpack.c.l.b16 %v481
      %v494 = vunpack.c.l.b16 %v482
      %v495 = vunpack.c.l.b16 %v483
      %v496 = vpack.c.b16 %v493, %v492
      %v497 = vpack.c.b16 %v495, %v494
      %vm500 = vcmask 261120
      %v502 = vsel %vm500, %v479, 0
      %504 = vmatpush.bf16.msra.mxu0 0
      %505 = vmatpush.bf16.msra.mxu0 0
      %506 = vmatpush.bf16.msra.mxu0 0
      %507 = vmatpush.bf16.msra.mxu0 0
      %508 = vmatpush.bf16.msra.mxu0 0
      %509 = vmatpush.bf16.msra.mxu0 0
      %510 = vmatpush.bf16.msra.mxu0 %v497
      %511 = vmatpush.bf16.msra.mxu0 %v496
      %512 = vmatmul.bf16.gmra.mxu0 %v502
      %v513 = vpop.f32.mrf.mxu0
      %v514 = vadd.f32 %v486, %v513
      %v515 = vpop.f32.mrf.mxu0
      %516 = vdwg.mxu0
      %v517 = vmul.f32 %v514, 0.35355338
      %v518 = vpack.c.bf16 %v517, %v517
      %vm519 = vcmask 59392
      %vm520 = vsmask.f32 2304
      %vm521 = vmand %vm519, %vm520
      %v522 = vld [vmem:[#allocation2] sm:$0x7]
      %v523 = vsel %vm521, %v518, %v522
      %524 = vst [vmem:[#allocation2] sm:$0x7] %v523
      %v525 = vpack.c.bf16 %v514, %v514
      %527 = vrot.lane.b32.xlu0 %v525, 96
      %v528 = vpop.permute.xlu0 %527
      %v530 = vld [vmem:[#allocation3] sm:$0x7]
      %v531 = vsel %vm521, %v528, %v530
      %532 = vst [vmem:[#allocation3] sm:$0x7] %v531
      %533 = vrot.lane.b32.xlu0 %v525, 64
      %v534 = vpop.permute.xlu0 %533
      %v536 = vld [vmem:[#allocation4] sm:$0x7]
      %v537 = vsel %vm521, %v534, %v536
      %538 = vst [vmem:[#allocation4] sm:$0x7] %v537
      %540 = vrot.lane.b32.xlu0 %v518, 120
      %v541 = vpop.permute.xlu0 %540
      %s543 = scalar_lea.vmem [#allocation2], 4
      %v544 = vld [vmem:[%s543] sm:$0x7]
      %v545 = vsel %vm521, %v541, %v544
      %546 = vst [vmem:[%s543] sm:$0x7] %v545
      %547 = vrot.lane.b32.xlu0 %v525, 88
      %v548 = vpop.permute.xlu0 %547
      %s550 = scalar_lea.vmem [#allocation3], 4
      %v551 = vld [vmem:[%s550] sm:$0x7]
      %v552 = vsel %vm521, %v548, %v551
      %553 = vst [vmem:[%s550] sm:$0x7] %v552
      %554 = vrot.lane.b32.xlu0 %v525, 56
      %v555 = vpop.permute.xlu0 %554
      %s557 = scalar_lea.vmem [#allocation4], 4
      %v558 = vld [vmem:[%s557] sm:$0x7]
      %v559 = vsel %vm521, %v555, %v558
      %560 = vst [vmem:[%s557] sm:$0x7] %v559
      %561 = vrot.lane.b32.xlu0 %v518, 112
      %v562 = vpop.permute.xlu0 %561
      %s564 = scalar_lea.vmem [#allocation2], 8
      %v565 = vld [vmem:[%s564] sm:$0x7]
      %v566 = vsel %vm521, %v562, %v565
      %567 = vst [vmem:[%s564] sm:$0x7] %v566
      %568 = vrot.lane.b32.xlu0 %v525, 80
      %v569 = vpop.permute.xlu0 %568
      %s571 = scalar_lea.vmem [#allocation3], 8
      %v572 = vld [vmem:[%s571] sm:$0x7]
      %v573 = vsel %vm521, %v569, %v572
      %574 = vst [vmem:[%s571] sm:$0x7] %v573
      %575 = vrot.lane.b32.xlu0 %v525, 48
      %v576 = vpop.permute.xlu0 %575
      %s578 = scalar_lea.vmem [#allocation4], 8
      %v579 = vld [vmem:[%s578] sm:$0x7]
      %v580 = vsel %vm521, %v576, %v579
      %581 = vst [vmem:[%s578] sm:$0x7] %v580
      %582 = vrot.lane.b32.xlu0 %v518, 104
      %v583 = vpop.permute.xlu0 %582
      %s585 = scalar_lea.vmem [#allocation2], 12
      %v586 = vld [vmem:[%s585] sm:$0x7]
      %v587 = vsel %vm521, %v583, %v586
      %588 = vst [vmem:[%s585] sm:$0x7] %v587
      %589 = vrot.lane.b32.xlu0 %v525, 72
      %v590 = vpop.permute.xlu0 %589
      %s592 = scalar_lea.vmem [#allocation3], 12
      %v593 = vld [vmem:[%s592] sm:$0x7]
      %v594 = vsel %vm521, %v590, %v593
      %595 = vst [vmem:[%s592] sm:$0x7] %v594
      %596 = vrot.lane.b32.xlu0 %v525, 40
      %v597 = vpop.permute.xlu0 %596
      %s599 = scalar_lea.vmem [#allocation4], 12
      %v600 = vld [vmem:[%s599] sm:$0x7]
      %v601 = vsel %vm521, %v597, %v600
      %602 = vst [vmem:[%s599] sm:$0x7] %v601
      %v603 = vld [vmem:[#allocation2] sm:$0x7]
      %v604 = vld [vmem:[#allocation2 + $0x4] sm:$0x7]
      %v605 = vld [vmem:[#allocation2 + $0x8] sm:$0x7]
      %v606 = vld [vmem:[#allocation2 + $0xc] sm:$0x7]
      %v607 = vld [vmem:[#allocation3] sm:$0x7]
      %v608 = vld [vmem:[#allocation3 + $0x4] sm:$0x7]
      %v609 = vld [vmem:[#allocation3 + $0x8] sm:$0x7]
      %v610 = vld [vmem:[#allocation3 + $0xc] sm:$0x7]
      %v611 = vld [vmem:[#allocation4] sm:$0x7]
      %v612 = vld [vmem:[#allocation4 + $0x4] sm:$0x7]
      %v613 = vld [vmem:[#allocation4 + $0x8] sm:$0x7]
      %v614 = vld [vmem:[#allocation4 + $0xc] sm:$0x7]
      %vm615 = vcmask 64512
      %v617 = vsel %vm615, %v603, 0
      %v620 = vsel %vm615, %v607, 0
      %622 = vmatpush.bf16.xpose.msra.mxu0 0
      %623 = vmatpush.bf16.xpose.msra.mxu0 0
      %624 = vmatpush.bf16.xpose.msra.mxu0 0
      %625 = vmatpush.bf16.xpose.msra.mxu0 0
      %626 = vmatpush.bf16.xpose.msra.mxu0 0
      %627 = vmatpush.bf16.xpose.msra.mxu0 0
      %628 = vmatpush.bf16.xpose.msra.mxu0 0
      %629 = vmatpush.bf16.xpose.msra.mxu0 %v620
      %630 = vmatmul.bf16.gmra.mxu0 %v617
      %v631 = vpop.f32.mrf.mxu0
      %v632 = vadd.f32 0.0, %v631
      %v633 = vpop.f32.mrf.mxu0
      %634 = vdwg.mxu0
      %v636 = vsel %vm615, %v604, 0
      %v639 = vsel %vm615, %v608, 0
      %641 = vmatpush.bf16.xpose.msra.mxu0 0
      %642 = vmatpush.bf16.xpose.msra.mxu0 0
      %643 = vmatpush.bf16.xpose.msra.mxu0 0
      %644 = vmatpush.bf16.xpose.msra.mxu0 0
      %645 = vmatpush.bf16.xpose.msra.mxu0 0
      %646 = vmatpush.bf16.xpose.msra.mxu0 0
      %647 = vmatpush.bf16.xpose.msra.mxu0 0
      %648 = vmatpush.bf16.xpose.msra.mxu0 %v639
      %649 = vmatmul.bf16.gmra.mxu0 %v636
      %v650 = vpop.f32.mrf.mxu0
      %v651 = vadd.f32 0.0, %v650
      %v652 = vpop.f32.mrf.mxu0
      %653 = vdwg.mxu0
      %v655 = vsel %vm615, %v605, 0
      %v658 = vsel %vm615, %v609, 0
      %660 = vmatpush.bf16.xpose.msra.mxu0 0
      %661 = vmatpush.bf16.xpose.msra.mxu0 0
      %662 = vmatpush.bf16.xpose.msra.mxu0 0
      %663 = vmatpush.bf16.xpose.msra.mxu0 0
      %664 = vmatpush.bf16.xpose.msra.mxu0 0
      %665 = vmatpush.bf16.xpose.msra.mxu0 0
      %666 = vmatpush.bf16.xpose.msra.mxu0 0
      %667 = vmatpush.bf16.xpose.msra.mxu0 %v658
      %668 = vmatmul.bf16.gmra.mxu0 %v655
      %v669 = vpop.f32.mrf.mxu0
      %v670 = vadd.f32 0.0, %v669
      %v671 = vpop.f32.mrf.mxu0
      %672 = vdwg.mxu0
      %v674 = vsel %vm615, %v606, 0
      %v677 = vsel %vm615, %v610, 0
      %679 = vmatpush.bf16.xpose.msra.mxu0 0
      %680 = vmatpush.bf16.xpose.msra.mxu0 0
      %681 = vmatpush.bf16.xpose.msra.mxu0 0
      %682 = vmatpush.bf16.xpose.msra.mxu0 0
      %683 = vmatpush.bf16.xpose.msra.mxu0 0
      %684 = vmatpush.bf16.xpose.msra.mxu0 0
      %685 = vmatpush.bf16.xpose.msra.mxu0 0
      %686 = vmatpush.bf16.xpose.msra.mxu0 %v677
      %687 = vmatmul.bf16.gmra.mxu0 %v674
      %v688 = vpop.f32.mrf.mxu0
      %v689 = vadd.f32 0.0, %v688
      %v690 = vpop.f32.mrf.mxu0
      %691 = vdwg.mxu0
      %vm692 = vcmask 36864
      %v693 = vsel %vm692, %v632, -inf
      %694 = vmax.xlane.f32.xlu0 %v693
      %v695 = vpop.xlane.xlu0 %694
      %v696 = vsel %vm692, %v651, -inf
      %697 = vmax.xlane.f32.xlu0 %v696
      %v698 = vpop.xlane.xlu0 %697
      %v699 = vsel %vm692, %v670, -inf
      %700 = vmax.xlane.f32.xlu0 %v699
      %v701 = vpop.xlane.xlu0 %700
      %v702 = vsel %vm692, %v689, -inf
      %703 = vmax.xlane.f32.xlu0 %v702
      %v704 = vpop.xlane.xlu0 %703
      %v705 = vsub.f32 %v632, %v695
      %v706 = vsub.f32 %v651, %v698
      %v707 = vsub.f32 %v670, %v701
      %v708 = vsub.f32 %v689, %v704
      %v709 = vmul.f32 %v705, 1.442695
      %v710 = vpow.pop %v709
      %v711 = vmul.f32 %v706, 1.442695
      %v712 = vpow.pop %v711
      %v713 = vmul.f32 %v707, 1.442695
      %v714 = vpow.pop %v713
      %v715 = vmul.f32 %v708, 1.442695
      %v716 = vpow.pop %v715
      %v717 = vsel %vm692, %v710, 0.0
      %718 = vadd.xlane.f32.xlu0 %v717
      %v719 = vpop.xlane.xlu0 %718
      %v720 = vsel %vm692, %v712, 0.0
      %721 = vadd.xlane.f32.xlu0 %v720
      %v722 = vpop.xlane.xlu0 %721
      %v723 = vsel %vm692, %v714, 0.0
      %724 = vadd.xlane.f32.xlu0 %v723
      %v725 = vpop.xlane.xlu0 %724
      %v726 = vsel %vm692, %v716, 0.0
      %727 = vadd.xlane.f32.xlu0 %v726
      %v728 = vpop.xlane.xlu0 %727
      %v729 = vrcp.pop %v719
      %v730 = vrcp.pop %v722
      %v731 = vrcp.pop %v725
      %v732 = vrcp.pop %v728
      %v733 = vmul.f32 %v710, %v729
      %v734 = vmul.f32 %v712, %v730
      %v735 = vmul.f32 %v714, %v731
      %v736 = vmul.f32 %v716, %v732
      %v737 = vpack.c.bf16 %v733, %v733
      %v738 = vpack.c.bf16 %v734, %v734
      %v739 = vpack.c.bf16 %v735, %v735
      %v740 = vpack.c.bf16 %v736, %v736
      %vm741 = vcmask 39936
      %v743 = vsel %vm741, %v737, 0
      %vm745 = vcmask 1041408
      %vm746 = vcmask 1042432
      %v747 = vsel %vm745, 4294967295, 65535
      %v748 = vsel %vm746, %v747, 0
      %v750 = vand.u32 %v611, %v748
      %752 = vmatpush.bf16.msra.mxu0 0
      %753 = vmatpush.bf16.msra.mxu0 0
      %754 = vmatpush.bf16.msra.mxu0 0
      %755 = vmatpush.bf16.msra.mxu0 0
      %756 = vmatpush.bf16.msra.mxu0 0
      %757 = vmatpush.bf16.msra.mxu0 0
      %758 = vmatpush.bf16.msra.mxu0 0
      %759 = vmatpush.bf16.msra.mxu0 %v750
      %760 = vmatmul.bf16.gmra.mxu0 %v743
      %v761 = vpop.f32.mrf.mxu0
      %v762 = vadd.f32 0.0, %v761
      %v763 = vpop.f32.mrf.mxu0
      %764 = vdwg.mxu0
      %v766 = vsel %vm741, %v738, 0
      %v769 = vand.u32 %v612, %v748
      %771 = vmatpush.bf16.msra.mxu0 0
      %772 = vmatpush.bf16.msra.mxu0 0
      %773 = vmatpush.bf16.msra.mxu0 0
      %774 = vmatpush.bf16.msra.mxu0 0
      %775 = vmatpush.bf16.msra.mxu0 0
      %776 = vmatpush.bf16.msra.mxu0 0
      %777 = vmatpush.bf16.msra.mxu0 0
      %778 = vmatpush.bf16.msra.mxu0 %v769
      %779 = vmatmul.bf16.gmra.mxu0 %v766
      %v780 = vpop.f32.mrf.mxu0
      %v781 = vadd.f32 0.0, %v780
      %v782 = vpop.f32.mrf.mxu0
      %783 = vdwg.mxu0
      %v785 = vsel %vm741, %v739, 0
      %v788 = vand.u32 %v613, %v748
      %790 = vmatpush.bf16.msra.mxu0 0
      %791 = vmatpush.bf16.msra.mxu0 0
      %792 = vmatpush.bf16.msra.mxu0 0
      %793 = vmatpush.bf16.msra.mxu0 0
      %794 = vmatpush.bf16.msra.mxu0 0
      %795 = vmatpush.bf16.msra.mxu0 0
      %796 = vmatpush.bf16.msra.mxu0 0
      %797 = vmatpush.bf16.msra.mxu0 %v788
      %798 = vmatmul.bf16.gmra.mxu0 %v785
      %v799 = vpop.f32.mrf.mxu0
      %v800 = vadd.f32 0.0, %v799
      %v801 = vpop.f32.mrf.mxu0
      %802 = vdwg.mxu0
      %v804 = vsel %vm741, %v740, 0
      %v807 = vand.u32 %v614, %v748
      %809 = vmatpush.bf16.msra.mxu0 0
      %810 = vmatpush.bf16.msra.mxu0 0
      %811 = vmatpush.bf16.msra.mxu0 0
      %812 = vmatpush.bf16.msra.mxu0 0
      %813 = vmatpush.bf16.msra.mxu0 0
      %814 = vmatpush.bf16.msra.mxu0 0
      %815 = vmatpush.bf16.msra.mxu0 0
      %816 = vmatpush.bf16.msra.mxu0 %v807
      %817 = vmatmul.bf16.gmra.mxu0 %v804
      %v818 = vpop.f32.mrf.mxu0
      %v819 = vadd.f32 0.0, %v818
      %v820 = vpop.f32.mrf.mxu0
      %821 = vdwg.mxu0
      %v822 = vpack.c.bf16 %v762, %v762
      %v823 = vld [vmem:[#allocation5] sm:$0x7]
      %v824 = vsel %vm521, %v822, %v823
      %825 = vst [vmem:[#allocation5] sm:$0x7] %v824
      %v826 = vpack.c.bf16 %v781, %v781
      %828 = vrot.lane.b32.xlu0 %v826, 8
      %v829 = vpop.permute.xlu0 %828
      %vm831 = vcmask 124992
      %vm832 = vmand %vm831, %vm520
      %v833 = vld [vmem:[#allocation5] sm:$0x7]
      %v834 = vsel %vm832, %v829, %v833
      %835 = vst [vmem:[#allocation5] sm:$0x7] %v834
      %v836 = vpack.c.bf16 %v800, %v800
      %838 = vrot.lane.b32.xlu0 %v836, 16
      %v839 = vpop.permute.xlu0 %838
      %vm841 = vcmask 190592
      %vm842 = vmand %vm841, %vm520
      %v843 = vld [vmem:[#allocation5] sm:$0x7]
      %v844 = vsel %vm842, %v839, %v843
      %845 = vst [vmem:[#allocation5] sm:$0x7] %v844
      %v846 = vpack.c.bf16 %v819, %v819
      %848 = vrot.lane.b32.xlu0 %v846, 24
      %v849 = vpop.permute.xlu0 %848
      %vm851 = vcmask 256192
      %vm852 = vmand %vm851, %vm520
      %v853 = vld [vmem:[#allocation5] sm:$0x7]
      %v854 = vsel %vm852, %v849, %v853
      %855 = vst [vmem:[#allocation5] sm:$0x7] %v854
      %v856 = vld [vmem:[#allocation5] sm:$0x7]
      %v857 = vld [vmem:[%s5] sm:$0xf]
      %v858 = vld [vmem:[%s5 + $0x4] sm:$0xf]
      %v859 = vld [vmem:[%s5 + $0x8] sm:$0xf]
      %v860 = vld [vmem:[%s5 + $0xc] sm:$0xf]
      %v865 = vunpack.c.l.b16 %v857
      %v866 = vunpack.c.l.b16 %v858
      %v867 = vunpack.c.l.b16 %v859
      %v868 = vunpack.c.l.b16 %v860
      %v869 = vpack.c.b16 %v866, %v865
      %v870 = vpack.c.b16 %v868, %v867
      %v874 = vsel %vm500, %v856, 0
      %876 = vmatpush.bf16.msra.mxu0 0
      %877 = vmatpush.bf16.msra.mxu0 0
      %878 = vmatpush.bf16.msra.mxu0 0
      %879 = vmatpush.bf16.msra.mxu0 0
      %880 = vmatpush.bf16.msra.mxu0 0
      %881 = vmatpush.bf16.msra.mxu0 0
      %882 = vmatpush.bf16.msra.mxu0 %v870
      %883 = vmatpush.bf16.msra.mxu0 %v869
      %884 = vmatmul.bf16.gmra.mxu0 %v874
      %v885 = vpop.f32.mrf.mxu0
      %v886 = vadd.f32 0.0, %v885
      %v887 = vpop.f32.mrf.mxu0
      %888 = vdwg.mxu0
      %v889 = vadd.f32 %v438, %v886
      %v890 = vld [vmem:[%s6] sm:$0x1]
      %v892 = vperm.slane %v890, 0
      %v894 = vadd.f32 %v889, %v892
      %v895 = vld [vmem:[%s7] sm:$0x1]
      %v896 = vld [vmem:[%s8] sm:$0x1]
      %v897 = vsel %vm441, %v894, 0.0
      %898 = vadd.xlane.f32.xlu0 %v897
      %v899 = vpop.xlane.xlu0 %898
      %v900 = vmul.f32 %v899, %v451
      %v901 = vsub.f32 %v894, %v900
      %v902 = vmul.f32 %v901, %v901
      %v903 = vsel %vm441, %v902, 0.0
      %904 = vadd.xlane.f32.xlu0 %v903
      %v905 = vpop.xlane.xlu0 %904
      %v906 = vmul.f32 %v905, %v451
      %v907 = vadd.f32 %v906, 1e-05
      %v908 = vrsqrt.pop %v907
      %v909 = vmul.f32 %v908, %v907
      %v910 = vmul.f32 %v909, %v908
      %v911 = vmul.f32 0.5, %v910
      %v912 = vsub.f32 1.5, %v911
      %v913 = vmul.f32 %v908, %v912
      %vm914 = vweird.f32 %v907
      %vm915 = vweird.f32 %v908
      %vm916 = vmor %vm914, %vm915
      %v917 = vsel %vm916, %v908, %v913
      %v918 = vmul.f32 %v901, %v917
      %v920 = vperm.slane %v895, 0
      %v922 = vmul.f32 %v918, %v920
      %v924 = vperm.slane %v896, 0
      %v926 = vadd.f32 %v922, %v924
      %v927 = vpack.c.bf16 %v926, %v926
      %v928 = vld [vmem:[%s9] sm:$0xf]
      %v929 = vld [vmem:[%s9 + $0x4] sm:$0xf]
      %v930 = vld [vmem:[%s9 + $0x8] sm:$0xf]
      %v931 = vld [vmem:[%s9 + $0xc] sm:$0xf]
      %v932 = vld [vmem:[%s10] sm:$0x1]
      %v934 = vperm.slane %v932, 0
      %v940 = vunpack.c.l.b16 %v928
      %v941 = vunpack.c.l.b16 %v929
      %v942 = vunpack.c.l.b16 %v930
      %v943 = vunpack.c.l.b16 %v931
      %v944 = vpack.c.b16 %v941, %v940
      %v945 = vpack.c.b16 %v943, %v942
      %v949 = vsel %vm500, %v927, 0
      %951 = vmatpush.bf16.msra.mxu0 0
      %952 = vmatpush.bf16.msra.mxu0 0
      %953 = vmatpush.bf16.msra.mxu0 0
      %954 = vmatpush.bf16.msra.mxu0 0
      %955 = vmatpush.bf16.msra.mxu0 0
      %956 = vmatpush.bf16.msra.mxu0 0
      %957 = vmatpush.bf16.msra.mxu0 %v945
      %958 = vmatpush.bf16.msra.mxu0 %v944
      %959 = vmatmul.bf16.gmra.mxu0 %v949
      %v960 = vpop.f32.mrf.mxu0
      %v961 = vadd.f32 %v934, %v960
      %v962 = vpop.f32.mrf.mxu0
      %963 = vdwg.mxu0
      %v964 = vmul.f32 %v961, 1.702
      %v965 = vxor.u32 %v964, 2147483648
      %v966 = vmul.f32 %v965, 1.442695
      %v967 = vpow.pop %v966
      %v968 = vadd.f32 %v967, 1.0
      %v969 = vrcp.pop %v968
      %v970 = vmul.f32 %v968, %v969
      %v971 = vsub.f32 1.0, %v970
      %v972 = vmul.f32 %v969, %v971
      %v973 = vadd.f32 %v969, %v972
      %vm974 = vweird.f32 %v968
      %vm975 = vweird.f32 %v969
      %vm976 = vmor %vm974, %vm975
      %v977 = vsel %vm976, %v969, %v973
      %v978 = vand.u32 2147483647, %v968
      %vm979 = vcmp.eq.f32.partialorder %v978, 8.507059e+37
      %v980 = vand.u32 %v968, 2147483648
      %v981 = vor.u32 1.1754944e-38, %v980
      %v982 = vsel %vm979, %v981, %v977
      %v983 = vmul.f32 1.0, %v982
      %v984 = vmul.f32 %v961, %v983
      %v985 = vpack.c.bf16 %v984, %v984
      %v986 = vld [vmem:[%s11] sm:$0xf]
      %v987 = vld [vmem:[%s11 + $0x4] sm:$0xf]
      %v988 = vld [vmem:[%s11 + $0x8] sm:$0xf]
      %v989 = vld [vmem:[%s11 + $0xc] sm:$0xf]
      %v990 = vld [vmem:[%s11 + $0x10] sm:$0xf]
      %v991 = vld [vmem:[%s11 + $0x14] sm:$0xf]
      %v992 = vld [vmem:[%s11 + $0x18] sm:$0xf]
      %v993 = vld [vmem:[%s11 + $0x1c] sm:$0xf]
      %v994 = vld [vmem:[%s11 + $0x20] sm:$0xf]
      %v995 = vld [vmem:[%s11 + $0x24] sm:$0xf]
      %v996 = vld [vmem:[%s11 + $0x28] sm:$0xf]
      %v997 = vld [vmem:[%s11 + $0x2c] sm:$0xf]
      %v998 = vld [vmem:[%s11 + $0x30] sm:$0xf]
      %v999 = vld [vmem:[%s11 + $0x34] sm:$0xf]
      %v1000 = vld [vmem:[%s11 + $0x38] sm:$0xf]
      %v1001 = vld [vmem:[%s11 + $0x3c] sm:$0xf]
      %v1018 = vunpack.c.l.b16 %v986
      %v1019 = vunpack.c.l.b16 %v987
      %v1020 = vunpack.c.l.b16 %v988
      %v1021 = vunpack.c.l.b16 %v989
      %v1022 = vunpack.c.l.b16 %v990
      %v1023 = vunpack.c.l.b16 %v991
      %v1024 = vunpack.c.l.b16 %v992
      %v1025 = vunpack.c.l.b16 %v993
      %v1026 = vunpack.c.l.b16 %v994
      %v1027 = vunpack.c.l.b16 %v995
      %v1028 = vunpack.c.l.b16 %v996
      %v1029 = vunpack.c.l.b16 %v997
      %v1030 = vunpack.c.l.b16 %v998
      %v1031 = vunpack.c.l.b16 %v999
      %v1032 = vunpack.c.l.b16 %v1000
      %v1033 = vunpack.c.l.b16 %v1001
      %v1034 = vpack.c.b16 %v1019, %v1018
      %v1035 = vpack.c.b16 %v1021, %v1020
      %v1036 = vpack.c.b16 %v1023, %v1022
      %v1037 = vpack.c.b16 %v1025, %v1024
      %v1038 = vpack.c.b16 %v1027, %v1026
      %v1039 = vpack.c.b16 %v1029, %v1028
      %v1040 = vpack.c.b16 %v1031, %v1030
      %v1041 = vpack.c.b16 %v1033, %v1032
      %1050 = vmatpush.bf16.msra.mxu0 %v1041
      %1051 = vmatpush.bf16.msra.mxu0 %v1040
      %1052 = vmatpush.bf16.msra.mxu0 %v1039
      %1053 = vmatpush.bf16.msra.mxu0 %v1038
      %1054 = vmatpush.bf16.msra.mxu0 %v1037
      %1055 = vmatpush.bf16.msra.mxu0 %v1036
      %1056 = vmatpush.bf16.msra.mxu0 %v1035
      %1057 = vmatpush.bf16.msra.mxu0 %v1034
      %1058 = vmatmul.bf16.gmra.mxu0 %v985
      %v1059 = vpop.f32.mrf.mxu0
      %v1060 = vadd.f32 0.0, %v1059
      %v1061 = vpop.f32.mrf.mxu0
      %1062 = vdwg.mxu0
      %v1063 = vadd.f32 %v894, %v1060
      %v1064 = vld [vmem:[%s12] sm:$0x1]
      %v1066 = vperm.slane %v1064, 0
      %v1068 = vadd.f32 %v1063, %v1066
      %v1069 = vpack.c.bf16 %v1068, %v1068
      %vm1070 = vcmask 256000
      %vm1071 = vmand %vm1070, %vm520
      %v1072 = vld [vmem:[%s435] sm:$0x7]
      %v1073 = vsel %vm1071, %v1069, %v1072
      %1074 = vst [vmem:[%s435] sm:$0x7] %v1073
      %p1075 = scmp.lt.s32.totalorder %s24, 1
      %s1076 = scalar_select %p1075, %s24, 1
      %s1077 = smul.addr %s1076, 4
      %s1078 = scalar_lea.vmem %s13, %s1077
      // Predicated region
      $region73: #{visual_transformer_forward.5} parent=71 // pred_check
        %p1079 = pneg %p320
      $region74: #{visual_transformer_forward.5} parent=71 // pred_check_branch
        %1081 = sbr.rel (%p1079) target = $region76
      $region75: #{visual_transformer_forward.5} parent=71 // pred_region
        _
      $region76: #{visual_transformer_forward.5} parent=71 // pred_fallthru
        _
    $region72: #{visual_transformer_forward.5} parent=5 // pred_fallthru
      _
    %p1082 = scmp.le.s32.totalorder 2, %s19
    // Predicated region
    $region77: #{visual_transformer_forward.5} parent=5 // pred_check
      %p1083 = pneg %p1082
    $region78: #{visual_transformer_forward.5} parent=5 // pred_check_branch
      %1085 = sbr.rel (%p1083) target = $region80
    $region79: #{visual_transformer_forward.5} parent=5 // pred_region
      %s1086 = ssub.s32 %s19, 2
      // Predicated region
      $region81: #{visual_transformer_forward.5} parent=79 // pred_check
        %p1087 = pneg %p326
      $region82: #{visual_transformer_forward.5} parent=79 // pred_check_branch
        %1089 = sbr.rel (%p1087) target = $region84
      $region83: #{visual_transformer_forward.5} parent=79 // pred_region
        %p1090 = scmp.lt.s32.totalorder %s25, 1
        %s1091 = scalar_select %p1090, %s25, 1
        %s1092 = smul.addr %s1091, 4
        %s1093 = scalar_lea.vmem %s13, %s1092
      $region84: #{visual_transformer_forward.5} parent=79 // pred_fallthru
        _
    $region80: #{visual_transformer_forward.5} parent=5 // pred_fallthru
      _
  $region6: #{visual_transformer_forward.5} parent=0 // loop_footer
    %s23 = sadd.s32 1, %s19
  $region7: #{visual_transformer_forward.5} parent=0 // loop_footer_branch
    %18 = sbr.rel target = $region3
  $region8: #{visual_transformer_forward.5} parent=0 // loop_exit
    _

</llo_original>
